<compile_context>
chip_gen: v7x
topology: tpu7x:2x2x1
jax: 0.10.0
libtpu: 0.0.40
codegen_flags: <defaults>
</compile_context>

<pallas_src>
import math

import jax
import jax.numpy as jnp
import numpy as np
from jax.experimental import pallas as pl
from jax.experimental.pallas import tpu as pltpu

LN_EPS = 1e-5    # nn.LayerNorm default eps (LayerNorm1d over the channel axis)
GRN_EPS = 1e-6   # ConvNeXt-v2 GlobalResponseNorm eps


def _gelu_exact(x):
    # PyTorch nn.GELU default = exact erf formulation
    return 0.5 * x * (1.0 + jax.lax.erf(x * (1.0 / math.sqrt(2.0))))


def convnext_kernel(x_ref, wdw_ref, gln_ref, bln_ref, w1_ref, b1_ref,
                    ggrn_ref, bgrn_ref, w2_ref, b2_ref, out_ref, xpad_s):
    # x_ref/out_ref: [bb*T, C] (bb batch elements of T time rows, channels on lanes)
    K = wdw_ref.shape[0]
    bb, Tp, C = xpad_s.shape
    T = Tp - (K - 1)
    F = w1_ref.shape[1]
    mm_dtype = w1_ref.dtype            # f32, or bf16 for the MXU fast path (all gens)

    # ---- causal depthwise conv (groups=C, no bias), ReflectionPad1d((0, K-1)) ----
    # Matches the PyTorch module exactly: pad is appended AFTER the sequence, then a
    # valid conv, so y[t] = sum_k xpad[t+k] * w[k].
    x3d = x_ref[...].astype(jnp.float32).reshape(bb, T, C)
    xpad_s[:, 0:T, :] = x3d                                    # one bulk aligned store
    for j in range(K - 1):                                     # reflected tail: x[T-2-j]
        # NOTE: a sublane-reverse (jnp.flip) would fold these K-1 small stores into
        # one; plain slice stores are kept for guaranteed Mosaic lowering.
        xpad_s[:, T + j:T + j + 1, :] = x3d[:, T - 2 - j:T - 1 - j, :]

    xp = xpad_s[...]                                           # padded slab loaded ONCE
    wdw = wdw_ref[...]                                         # [K, C] depthwise taps
    y = xp[:, 0:T, :] * wdw[0:1, :]                            # full-width [bb,T,C] FMAs
    for k in range(1, K):
        y = y + xp[:, k:k + T, :] * wdw[k:k + 1, :]
    y = y.reshape(bb * T, C)

    # ---- LayerNorm over channels (per (b, t) row) ----
    mean = jnp.mean(y, axis=-1, keepdims=True)
    var = jnp.mean(jnp.square(y - mean), axis=-1, keepdims=True)
    xn = (y - mean) * jax.lax.rsqrt(var + LN_EPS)
    xn = xn * gln_ref[...] + bln_ref[...]

    # ---- 1x1 conv (C->F) -> exact-erf GELU ----  (M = bb*T rows on the MXU)
    h = jnp.dot(xn.astype(mm_dtype), w1_ref[...],
                preferred_element_type=jnp.float32) + b1_ref[...]
    h = _gelu_exact(h)                                         # [bb*T, F]

    # ---- GRN (per batch element), batched: L2 over time, mean over channels ----
    h3 = h.reshape(bb, T, F)
    gx = jnp.sqrt(jnp.sum(h3 * h3, axis=1, keepdims=True))             # [bb, 1, F]
    nx = gx / (jnp.mean(gx, axis=-1, keepdims=True) + GRN_EPS)         # [bb, 1, F]
    h3 = ggrn_ref[...].reshape(1, 1, F) * (h3 * nx) + bgrn_ref[...].reshape(1, 1, F) + h3

    # ---- 1x1 conv (F->C) + residual (residual read late: short live range) ----
    y2 = jnp.dot(h3.reshape(bb * T, F).astype(mm_dtype), w2_ref[...],
                 preferred_element_type=jnp.float32) + b2_ref[...]
    out_ref[...] = (x_ref[...] + y2).astype(out_ref.dtype)


def prepare_params(params, compute_dtype=jnp.float32):
    """Re-layout (+ optionally cast) weights ONCE at init; hoisted out of the forward."""
    C, K = params["wdw"].shape
    F = params["w1"].shape[0]
    return {
        "wdw": jnp.transpose(params["wdw"], (1, 0)),                       # [K, C]
        "gln": params["gln"].reshape(1, C),
        "bln": params["bln"].reshape(1, C),
        "w1":  jnp.transpose(params["w1"], (1, 0)).astype(compute_dtype),  # [C, F]
        "b1":  params["b1"].reshape(1, F),
        "ggrn": params["ggrn"].reshape(1, F),
        "bgrn": params["bgrn"].reshape(1, F),
        "w2":  jnp.transpose(params["w2"], (1, 0)).astype(compute_dtype),  # [F, C]
        "b2":  params["b2"].reshape(1, C),
    }


def convnext_layer1d_btc(x_btc, kp, kernel_size, *, grid_steps=1, core_parallel=False):
    """Channels-last entry point: x_btc [B, T, C] -> [B, T, C] (prepared params `kp`).

    grid_steps=1 (default) is best on single-TC v5e/v6e: one big block, max MXU M.
    On v7x pass grid_steps=2, core_parallel=True for an explicit 2-way TensorCore split.
    """
    B, T, C = x_btc.shape
    K = kernel_size
    assert kp["wdw"].shape == (K, C)
    F = kp["w1"].shape[1]
    assert T >= K, "reflection pad (K-1) requires T >= kernel_size"
    assert B % grid_steps == 0
    bb = B // grid_steps
    assert (bb * T) % 8 == 0 and C % 128 == 0, "need (8,128)-aligned lane-dense blocks"
    Tp = T + K - 1

    x2d = x_btc.reshape(B * T, C)                              # free row-major regroup

    def full(shape):
        n = len(shape)
        return pl.BlockSpec(shape, lambda i, _n=n: (0,) * _n)

    if core_parallel and grid_steps > 1:
        dims = (pltpu.CORE_PARALLEL,)                          # v7x explicit 2-core split
    elif grid_steps > 1:
        dims = ("parallel",)
    else:
        dims = ("arbitrary",)

    out2d = pl.pallas_call(
        convnext_kernel,
        out_shape=jax.ShapeDtypeStruct((B * T, C), x_btc.dtype),
        grid=(grid_steps,),
        in_specs=[
            pl.BlockSpec((bb * T, C), lambda i: (i, 0)),       # activations per step
            full((K, C)),                                      # depthwise taps
            full((1, C)), full((1, C)),                        # LN gamma/beta
            full((C, F)), full((1, F)),                        # c1 weight/bias
            full((1, F)), full((1, F)),                        # GRN gamma/beta
            full((F, C)), full((1, C)),                        # c2 weight/bias
        ],
        out_specs=pl.BlockSpec((bb * T, C), lambda i: (i, 0)),
        scratch_shapes=[pltpu.VMEM((bb, Tp, C), jnp.float32)], # reflection-padded slab
        compiler_params=pltpu.CompilerParams(dimension_semantics=dims),
    )(x2d, kp["wdw"], kp["gln"], kp["bln"], kp["w1"], kp["b1"],
      kp["ggrn"], kp["bgrn"], kp["w2"], kp["b2"])

    return out2d.reshape(B, T, C)


def convnext_layer1d(x_ncl, kp, kernel_size, **kwargs):
    """PyTorch-layout wrapper: x [B, C, T] -> [B, C, T]. NCL<->NLC only at the boundary."""
    x_btc = jnp.transpose(x_ncl, (0, 2, 1))
    y_btc = convnext_layer1d_btc(x_btc, kp, kernel_size, **kwargs)
    return jnp.transpose(y_btc, (0, 2, 1))


def ref_forward(x, params, K):
    """Pure-JAX reference mirroring the PyTorch module in NCL layout (f32, exact precision)."""
    B, C, T = x.shape
    hi = jax.lax.Precision.HIGHEST
    refl = jnp.flip(x[:, :, T - K:T - 1], axis=2)
    xpad = jnp.concatenate([x, refl], axis=2)                    # [B, C, T+K-1]
    y = jnp.zeros((B, C, T), jnp.float32)
    for k in range(K):
        y = y + xpad[:, :, k:k + T] * params["wdw"][None, :, k, None]
    mean = y.mean(axis=1, keepdims=True)
    var = ((y - mean) ** 2).mean(axis=1, keepdims=True)
    yn = (y - mean) / jnp.sqrt(var + LN_EPS)
    yn = yn * params["gln"][None, :, None] + params["bln"][None, :, None]
    h = jnp.einsum("fc,bct->bft", params["w1"], yn, precision=hi) + params["b1"][None, :, None]
    h = _gelu_exact(h)
    gx = jnp.sqrt(jnp.sum(h * h, axis=2, keepdims=True))
    nx = gx / (jnp.mean(gx, axis=1, keepdims=True) + GRN_EPS)
    h = params["ggrn"][None, :, None] * (h * nx) + params["bgrn"][None, :, None] + h
    y2 = jnp.einsum("cf,bft->bct", params["w2"], h, precision=hi) + params["b2"][None, :, None]
    return x + y2


if __name__ == "__main__":
    B, C, T = 4, 128, 16         # batch, channels (lane-dense: multiple of 128), time
    F = 256                      # ffn_channels
    K = 7                        # kernel_size (causal=True, grn=True, glu=False)

    key = jax.random.PRNGKey(0)
    ks = jax.random.split(key, 10)
    params = {
        "wdw":  0.2 * jax.random.normal(ks[0], (C, K), jnp.float32),   # depthwise weight [C,K]
        "gln":  1.0 + 0.1 * jax.random.normal(ks[1], (C,), jnp.float32),
        "bln":  0.1 * jax.random.normal(ks[2], (C,), jnp.float32),
        "w1":   0.1 * jax.random.normal(ks[3], (F, C), jnp.float32),   # c1: Conv1d(C->F,1)
        "b1":   0.1 * jax.random.normal(ks[4], (F,), jnp.float32),
        "ggrn": 0.1 * jax.random.normal(ks[5], (F,), jnp.float32),     # GRN gamma
        "bgrn": 0.1 * jax.random.normal(ks[6], (F,), jnp.float32),     # GRN beta
        "w2":   0.1 * jax.random.normal(ks[7], (C, F), jnp.float32),   # c2: Conv1d(F->C,1)
        "b2":   0.1 * jax.random.normal(ks[8], (C,), jnp.float32),
    }
    x = jax.random.normal(ks[9], (B, C, T), jnp.float32)               # NCL input

    ref = jax.block_until_ready(ref_forward(x, params, K))

    # f32 path (default): single block, full batch in the MXU M dimension
    kp_f32 = prepare_params(params)                    # hoisted re-layout (once at init)
    out = jax.block_until_ready(convnext_layer1d(x, kp_f32, K))
    assert out.shape == (B, C, T)
    np.testing.assert_allclose(np.asarray(out), np.asarray(ref), rtol=1e-3, atol=1e-3)

    # 2-step grid path (what a v7x deployment would use, optionally with core_parallel=True)
    out2 = jax.block_until_ready(convnext_layer1d(x, kp_f32, K, grid_steps=2))
    np.testing.assert_allclose(np.asarray(out2), np.asarray(ref), rtol=1e-3, atol=1e-3)

    # bf16-operand MXU path (f32 accumulation) -- fast path on every generation; looser tol
    kp_bf16 = prepare_params(params, compute_dtype=jnp.bfloat16)
    out_bf16 = jax.block_until_ready(convnext_layer1d(x, kp_bf16, K))
    np.testing.assert_allclose(np.asarray(out_bf16), np.asarray(ref), rtol=1e-1, atol=1e-1)

    print("KERNEL_OK")
</pallas_src>

<mosaic_0001>
module attributes {stable_mosaic.version = 11 : i64} {
  func.func @convnext_kernel(%arg0: i32, %arg1: memref<64x128xf32, #tpu.memory_space<vmem>>, %arg2: memref<7x128xf32, #tpu.memory_space<vmem>>, %arg3: memref<1x128xf32, #tpu.memory_space<vmem>>, %arg4: memref<1x128xf32, #tpu.memory_space<vmem>>, %arg5: memref<128x256xf32, #tpu.memory_space<vmem>>, %arg6: memref<1x256xf32, #tpu.memory_space<vmem>>, %arg7: memref<1x256xf32, #tpu.memory_space<vmem>>, %arg8: memref<1x256xf32, #tpu.memory_space<vmem>>, %arg9: memref<256x128xf32, #tpu.memory_space<vmem>>, %arg10: memref<1x128xf32, #tpu.memory_space<vmem>>, %arg11: memref<64x128xf32, #tpu.memory_space<vmem>>, %arg12: memref<4x22x128xf32, #tpu.memory_space<vmem>>) attributes {dimension_semantics = [#tpu.dimension_semantics<arbitrary>], iteration_bounds = array<i64: 1>, scalar_prefetch = 0 : i64, scratch_operands = 1 : i64, tpu.core_type = #tpu.core_type<tc>, window_params = [{transform_indices = @transform_0, window_bounds = array<i64: 64, 128>}, {pipeline_mode = #tpu.pipeline_mode<synchronous>, transform_indices = @transform_1, window_bounds = array<i64: 7, 128>}, {pipeline_mode = #tpu.pipeline_mode<synchronous>, transform_indices = @transform_2, window_bounds = array<i64: 1, 128>}, {pipeline_mode = #tpu.pipeline_mode<synchronous>, transform_indices = @transform_3, window_bounds = array<i64: 1, 128>}, {pipeline_mode = #tpu.pipeline_mode<synchronous>, transform_indices = @transform_4, window_bounds = array<i64: 128, 256>}, {pipeline_mode = #tpu.pipeline_mode<synchronous>, transform_indices = @transform_5, window_bounds = array<i64: 1, 256>}, {pipeline_mode = #tpu.pipeline_mode<synchronous>, transform_indices = @transform_6, window_bounds = array<i64: 1, 256>}, {pipeline_mode = #tpu.pipeline_mode<synchronous>, transform_indices = @transform_7, window_bounds = array<i64: 1, 256>}, {pipeline_mode = #tpu.pipeline_mode<synchronous>, transform_indices = @transform_8, window_bounds = array<i64: 256, 128>}, {pipeline_mode = #tpu.pipeline_mode<synchronous>, transform_indices = @transform_9, window_bounds = array<i64: 1, 128>}, {transform_indices = @transform_10, window_bounds = array<i64: 64, 128>}]} {
    %c0 = arith.constant 0 : index
    %c0_0 = arith.constant 0 : index
    %0 = vector.load %arg1[%c0, %c0_0] : memref<64x128xf32, #tpu.memory_space<vmem>>, vector<64x128xf32>
    %1 = vector.shape_cast %0 : vector<64x128xf32> to vector<4x16x128xf32>
    %c0_1 = arith.constant 0 : index
    %c0_2 = arith.constant 0 : index
    %c0_3 = arith.constant 0 : index
    %2 = vector.load %arg12[%c0_1, %c0_2, %c0_3] : memref<4x22x128xf32, #tpu.memory_space<vmem>>, vector<4x16x128xf32>
    tpu.vector_store %arg12[%c0_1, %c0_2, %c0_3], %1 {strides = array<i32>} : memref<4x22x128xf32, #tpu.memory_space<vmem>>, vector<4x16x128xf32>,
    %3 = vector.extract_strided_slice %1 {offsets = [0, 14, 0], sizes = [4, 1, 128], strides = [1, 1, 1]} : vector<4x16x128xf32> to vector<4x1x128xf32>
    %c0_4 = arith.constant 0 : index
    %c16 = arith.constant 16 : index
    %c0_5 = arith.constant 0 : index
    %4 = vector.load %arg12[%c0_4, %c16, %c0_5] : memref<4x22x128xf32, #tpu.memory_space<vmem>>, vector<4x1x128xf32>
    tpu.vector_store %arg12[%c0_4, %c16, %c0_5], %3 {strides = array<i32>} : memref<4x22x128xf32, #tpu.memory_space<vmem>>, vector<4x1x128xf32>,
    %5 = vector.extract_strided_slice %1 {offsets = [0, 13, 0], sizes = [4, 1, 128], strides = [1, 1, 1]} : vector<4x16x128xf32> to vector<4x1x128xf32>
    %c0_6 = arith.constant 0 : index
    %c17 = arith.constant 17 : index
    %c0_7 = arith.constant 0 : index
    %6 = vector.load %arg12[%c0_6, %c17, %c0_7] : memref<4x22x128xf32, #tpu.memory_space<vmem>>, vector<4x1x128xf32>
    tpu.vector_store %arg12[%c0_6, %c17, %c0_7], %5 {strides = array<i32>} : memref<4x22x128xf32, #tpu.memory_space<vmem>>, vector<4x1x128xf32>,
    %7 = vector.extract_strided_slice %1 {offsets = [0, 12, 0], sizes = [4, 1, 128], strides = [1, 1, 1]} : vector<4x16x128xf32> to vector<4x1x128xf32>
    %c0_8 = arith.constant 0 : index
    %c18 = arith.constant 18 : index
    %c0_9 = arith.constant 0 : index
    %8 = vector.load %arg12[%c0_8, %c18, %c0_9] : memref<4x22x128xf32, #tpu.memory_space<vmem>>, vector<4x1x128xf32>
    tpu.vector_store %arg12[%c0_8, %c18, %c0_9], %7 {strides = array<i32>} : memref<4x22x128xf32, #tpu.memory_space<vmem>>, vector<4x1x128xf32>,
    %9 = vector.extract_strided_slice %1 {offsets = [0, 11, 0], sizes = [4, 1, 128], strides = [1, 1, 1]} : vector<4x16x128xf32> to vector<4x1x128xf32>
    %c0_10 = arith.constant 0 : index
    %c19 = arith.constant 19 : index
    %c0_11 = arith.constant 0 : index
    %10 = vector.load %arg12[%c0_10, %c19, %c0_11] : memref<4x22x128xf32, #tpu.memory_space<vmem>>, vector<4x1x128xf32>
    tpu.vector_store %arg12[%c0_10, %c19, %c0_11], %9 {strides = array<i32>} : memref<4x22x128xf32, #tpu.memory_space<vmem>>, vector<4x1x128xf32>,
    %11 = vector.extract_strided_slice %1 {offsets = [0, 10, 0], sizes = [4, 1, 128], strides = [1, 1, 1]} : vector<4x16x128xf32> to vector<4x1x128xf32>
    %c0_12 = arith.constant 0 : index
    %c20 = arith.constant 20 : index
    %c0_13 = arith.constant 0 : index
    %12 = vector.load %arg12[%c0_12, %c20, %c0_13] : memref<4x22x128xf32, #tpu.memory_space<vmem>>, vector<4x1x128xf32>
    tpu.vector_store %arg12[%c0_12, %c20, %c0_13], %11 {strides = array<i32>} : memref<4x22x128xf32, #tpu.memory_space<vmem>>, vector<4x1x128xf32>,
    %13 = vector.extract_strided_slice %1 {offsets = [0, 9, 0], sizes = [4, 1, 128], strides = [1, 1, 1]} : vector<4x16x128xf32> to vector<4x1x128xf32>
    %c0_14 = arith.constant 0 : index
    %c21 = arith.constant 21 : index
    %c0_15 = arith.constant 0 : index
    %14 = vector.load %arg12[%c0_14, %c21, %c0_15] : memref<4x22x128xf32, #tpu.memory_space<vmem>>, vector<4x1x128xf32>
    tpu.vector_store %arg12[%c0_14, %c21, %c0_15], %13 {strides = array<i32>} : memref<4x22x128xf32, #tpu.memory_space<vmem>>, vector<4x1x128xf32>,
    %c0_16 = arith.constant 0 : index
    %c0_17 = arith.constant 0 : index
    %c0_18 = arith.constant 0 : index
    %15 = vector.load %arg12[%c0_16, %c0_17, %c0_18] : memref<4x22x128xf32, #tpu.memory_space<vmem>>, vector<4x22x128xf32>
    %c0_19 = arith.constant 0 : index
    %c0_20 = arith.constant 0 : index
    %16 = vector.load %arg2[%c0_19, %c0_20] : memref<7x128xf32, #tpu.memory_space<vmem>>, vector<7x128xf32>
    %17 = vector.extract_strided_slice %15 {offsets = [0, 0, 0], sizes = [4, 16, 128], strides = [1, 1, 1]} : vector<4x22x128xf32> to vector<4x16x128xf32>
    %18 = vector.extract_strided_slice %16 {offsets = [0, 0], sizes = [1, 128], strides = [1, 1]} : vector<7x128xf32> to vector<1x128xf32>
    %19 = vector.shape_cast %18 : vector<1x128xf32> to vector<1x1x128xf32>
    %20 = vector.broadcast %19 : vector<1x1x128xf32> to vector<4x16x128xf32>
    %21 = arith.mulf %17, %20 : vector<4x16x128xf32>
    %22 = vector.extract_strided_slice %15 {offsets = [0, 1, 0], sizes = [4, 16, 128], strides = [1, 1, 1]} : vector<4x22x128xf32> to vector<4x16x128xf32>
    %23 = vector.extract_strided_slice %16 {offsets = [1, 0], sizes = [1, 128], strides = [1, 1]} : vector<7x128xf32> to vector<1x128xf32>
    %24 = vector.shape_cast %23 : vector<1x128xf32> to vector<1x1x128xf32>
    %25 = vector.broadcast %24 : vector<1x1x128xf32> to vector<4x16x128xf32>
    %26 = arith.mulf %22, %25 : vector<4x16x128xf32>
    %27 = arith.addf %21, %26 : vector<4x16x128xf32>
    %28 = vector.extract_strided_slice %15 {offsets = [0, 2, 0], sizes = [4, 16, 128], strides = [1, 1, 1]} : vector<4x22x128xf32> to vector<4x16x128xf32>
    %29 = vector.extract_strided_slice %16 {offsets = [2, 0], sizes = [1, 128], strides = [1, 1]} : vector<7x128xf32> to vector<1x128xf32>
    %30 = vector.shape_cast %29 : vector<1x128xf32> to vector<1x1x128xf32>
    %31 = vector.broadcast %30 : vector<1x1x128xf32> to vector<4x16x128xf32>
    %32 = arith.mulf %28, %31 : vector<4x16x128xf32>
    %33 = arith.addf %27, %32 : vector<4x16x128xf32>
    %34 = vector.extract_strided_slice %15 {offsets = [0, 3, 0], sizes = [4, 16, 128], strides = [1, 1, 1]} : vector<4x22x128xf32> to vector<4x16x128xf32>
    %35 = vector.extract_strided_slice %16 {offsets = [3, 0], sizes = [1, 128], strides = [1, 1]} : vector<7x128xf32> to vector<1x128xf32>
    %36 = vector.shape_cast %35 : vector<1x128xf32> to vector<1x1x128xf32>
    %37 = vector.broadcast %36 : vector<1x1x128xf32> to vector<4x16x128xf32>
    %38 = arith.mulf %34, %37 : vector<4x16x128xf32>
    %39 = arith.addf %33, %38 : vector<4x16x128xf32>
    %40 = vector.extract_strided_slice %15 {offsets = [0, 4, 0], sizes = [4, 16, 128], strides = [1, 1, 1]} : vector<4x22x128xf32> to vector<4x16x128xf32>
    %41 = vector.extract_strided_slice %16 {offsets = [4, 0], sizes = [1, 128], strides = [1, 1]} : vector<7x128xf32> to vector<1x128xf32>
    %42 = vector.shape_cast %41 : vector<1x128xf32> to vector<1x1x128xf32>
    %43 = vector.broadcast %42 : vector<1x1x128xf32> to vector<4x16x128xf32>
    %44 = arith.mulf %40, %43 : vector<4x16x128xf32>
    %45 = arith.addf %39, %44 : vector<4x16x128xf32>
    %46 = vector.extract_strided_slice %15 {offsets = [0, 5, 0], sizes = [4, 16, 128], strides = [1, 1, 1]} : vector<4x22x128xf32> to vector<4x16x128xf32>
    %47 = vector.extract_strided_slice %16 {offsets = [5, 0], sizes = [1, 128], strides = [1, 1]} : vector<7x128xf32> to vector<1x128xf32>
    %48 = vector.shape_cast %47 : vector<1x128xf32> to vector<1x1x128xf32>
    %49 = vector.broadcast %48 : vector<1x1x128xf32> to vector<4x16x128xf32>
    %50 = arith.mulf %46, %49 : vector<4x16x128xf32>
    %51 = arith.addf %45, %50 : vector<4x16x128xf32>
    %52 = vector.extract_strided_slice %15 {offsets = [0, 6, 0], sizes = [4, 16, 128], strides = [1, 1, 1]} : vector<4x22x128xf32> to vector<4x16x128xf32>
    %53 = vector.extract_strided_slice %16 {offsets = [6, 0], sizes = [1, 128], strides = [1, 1]} : vector<7x128xf32> to vector<1x128xf32>
    %54 = vector.shape_cast %53 : vector<1x128xf32> to vector<1x1x128xf32>
    %55 = vector.broadcast %54 : vector<1x1x128xf32> to vector<4x16x128xf32>
    %56 = arith.mulf %52, %55 : vector<4x16x128xf32>
    %57 = arith.addf %51, %56 : vector<4x16x128xf32>
    %58 = vector.shape_cast %57 : vector<4x16x128xf32> to vector<64x128xf32>
    %cst = arith.constant dense<0.000000e+00> : vector<64xf32>
    %59 = vector.multi_reduction <add>, %58, %cst [1] : vector<64x128xf32> to vector<64xf32>
    %60 = vector.shape_cast %59 : vector<64xf32> to vector<64x1xf32>
    %cst_21 = arith.constant 1.280000e+02 : f32
    %61 = vector.broadcast %cst_21 : f32 to vector<64x1xf32>
    %62 = arith.divf %60, %61 : vector<64x1xf32>
    %63 = vector.broadcast %62 : vector<64x1xf32> to vector<64x128xf32>
    %64 = arith.subf %58, %63 : vector<64x128xf32>
    %65 = arith.mulf %64, %64 : vector<64x128xf32>
    %cst_22 = arith.constant dense<0.000000e+00> : vector<64xf32>
    %66 = vector.multi_reduction <add>, %65, %cst_22 [1] : vector<64x128xf32> to vector<64xf32>
    %67 = vector.shape_cast %66 : vector<64xf32> to vector<64x1xf32>
    %cst_23 = arith.constant 1.280000e+02 : f32
    %68 = vector.broadcast %cst_23 : f32 to vector<64x1xf32>
    %69 = arith.divf %67, %68 : vector<64x1xf32>
    %70 = vector.broadcast %62 : vector<64x1xf32> to vector<64x128xf32>
    %71 = arith.subf %58, %70 : vector<64x128xf32>
    %cst_24 = arith.constant 9.99999974E-6 : f32
    %72 = vector.broadcast %cst_24 : f32 to vector<64x1xf32>
    %73 = arith.addf %69, %72 : vector<64x1xf32>
    %74 = math.rsqrt %73 : vector<64x1xf32>
    %75 = vector.broadcast %74 : vector<64x1xf32> to vector<64x128xf32>
    %76 = arith.mulf %71, %75 : vector<64x128xf32>
    %c0_25 = arith.constant 0 : index
    %c0_26 = arith.constant 0 : index
    %77 = vector.load %arg3[%c0_25, %c0_26] : memref<1x128xf32, #tpu.memory_space<vmem>>, vector<1x128xf32>
    %78 = vector.broadcast %77 : vector<1x128xf32> to vector<64x128xf32>
    %79 = arith.mulf %76, %78 : vector<64x128xf32>
    %c0_27 = arith.constant 0 : index
    %c0_28 = arith.constant 0 : index
    %80 = vector.load %arg4[%c0_27, %c0_28] : memref<1x128xf32, #tpu.memory_space<vmem>>, vector<1x128xf32>
    %81 = vector.broadcast %80 : vector<1x128xf32> to vector<64x128xf32>
    %82 = arith.addf %79, %81 : vector<64x128xf32>
    %c0_29 = arith.constant 0 : index
    %c0_30 = arith.constant 0 : index
    %83 = vector.load %arg5[%c0_29, %c0_30] : memref<128x256xf32, #tpu.memory_space<vmem>>, vector<128x256xf32>
    %cst_31 = arith.constant dense<0.000000e+00> : vector<64x256xf32>
    %84 = tpu.matmul %82, %83, %cst_31 {dimension_numbers = #tpu.dot_dimension_numbers<[1], [0], [0], [1], [0, 0, 1, 1], [], []>} : vector<64x128xf32>, vector<128x256xf32>, vector<64x256xf32> -> vector<64x256xf32>
    %c0_32 = arith.constant 0 : index
    %c0_33 = arith.constant 0 : index
    %85 = vector.load %arg6[%c0_32, %c0_33] : memref<1x256xf32, #tpu.memory_space<vmem>>, vector<1x256xf32>
    %86 = vector.broadcast %85 : vector<1x256xf32> to vector<64x256xf32>
    %87 = arith.addf %84, %86 : vector<64x256xf32>
    %cst_34 = arith.constant 5.000000e-01 : f32
    %88 = vector.broadcast %cst_34 : f32 to vector<64x256xf32>
    %89 = arith.mulf %88, %87 : vector<64x256xf32>
    %cst_35 = arith.constant 0.707106769 : f32
    %90 = vector.broadcast %cst_35 : f32 to vector<64x256xf32>
    %91 = arith.mulf %87, %90 : vector<64x256xf32>
    %92 = math.erf %91 : vector<64x256xf32>
    %cst_36 = arith.constant 1.000000e+00 : f32
    %93 = vector.broadcast %cst_36 : f32 to vector<64x256xf32>
    %94 = arith.addf %93, %92 : vector<64x256xf32>
    %95 = arith.mulf %89, %94 : vector<64x256xf32>
    %96 = vector.shape_cast %95 : vector<64x256xf32> to vector<4x16x256xf32>
    %97 = arith.mulf %96, %96 : vector<4x16x256xf32>
    %cst_37 = arith.constant dense<0.000000e+00> : vector<4x256xf32>
    %98 = vector.multi_reduction <add>, %97, %cst_37 [1] : vector<4x16x256xf32> to vector<4x256xf32>
    %99 = vector.shape_cast %98 : vector<4x256xf32> to vector<4x1x256xf32>
    %100 = math.sqrt %99 : vector<4x1x256xf32>
    %cst_38 = arith.constant dense<0.000000e+00> : vector<4x1xf32>
    %101 = vector.multi_reduction <add>, %100, %cst_38 [2] : vector<4x1x256xf32> to vector<4x1xf32>
    %102 = vector.shape_cast %101 : vector<4x1xf32> to vector<4x1x1xf32>
    %cst_39 = arith.constant 2.560000e+02 : f32
    %103 = vector.broadcast %cst_39 : f32 to vector<4x1x1xf32>
    %104 = arith.divf %102, %103 : vector<4x1x1xf32>
    %cst_40 = arith.constant 9.99999997E-7 : f32
    %105 = vector.broadcast %cst_40 : f32 to vector<4x1x1xf32>
    %106 = arith.addf %104, %105 : vector<4x1x1xf32>
    %107 = vector.broadcast %106 : vector<4x1x1xf32> to vector<4x1x256xf32>
    %108 = arith.divf %100, %107 : vector<4x1x256xf32>
    %c0_41 = arith.constant 0 : index
    %c0_42 = arith.constant 0 : index
    %109 = vector.load %arg7[%c0_41, %c0_42] : memref<1x256xf32, #tpu.memory_space<vmem>>, vector<1x256xf32>
    %110 = vector.shape_cast %109 : vector<1x256xf32> to vector<1x1x256xf32>
    %111 = vector.broadcast %108 : vector<4x1x256xf32> to vector<4x16x256xf32>
    %112 = arith.mulf %96, %111 : vector<4x16x256xf32>
    %113 = vector.broadcast %110 : vector<1x1x256xf32> to vector<4x16x256xf32>
    %114 = arith.mulf %113, %112 : vector<4x16x256xf32>
    %c0_43 = arith.constant 0 : index
    %c0_44 = arith.constant 0 : index
    %115 = vector.load %arg8[%c0_43, %c0_44] : memref<1x256xf32, #tpu.memory_space<vmem>>, vector<1x256xf32>
    %116 = vector.shape_cast %115 : vector<1x256xf32> to vector<1x1x256xf32>
    %117 = vector.broadcast %116 : vector<1x1x256xf32> to vector<4x16x256xf32>
    %118 = arith.addf %114, %117 : vector<4x16x256xf32>
    %119 = arith.addf %118, %96 : vector<4x16x256xf32>
    %120 = vector.shape_cast %119 : vector<4x16x256xf32> to vector<64x256xf32>
    %c0_45 = arith.constant 0 : index
    %c0_46 = arith.constant 0 : index
    %121 = vector.load %arg9[%c0_45, %c0_46] : memref<256x128xf32, #tpu.memory_space<vmem>>, vector<256x128xf32>
    %cst_47 = arith.constant dense<0.000000e+00> : vector<64x128xf32>
    %122 = tpu.matmul %120, %121, %cst_47 {dimension_numbers = #tpu.dot_dimension_numbers<[1], [0], [0], [1], [0, 0, 1, 1], [], []>} : vector<64x256xf32>, vector<256x128xf32>, vector<64x128xf32> -> vector<64x128xf32>
    %c0_48 = arith.constant 0 : index
    %c0_49 = arith.constant 0 : index
    %123 = vector.load %arg10[%c0_48, %c0_49] : memref<1x128xf32, #tpu.memory_space<vmem>>, vector<1x128xf32>
    %124 = vector.broadcast %123 : vector<1x128xf32> to vector<64x128xf32>
    %125 = arith.addf %122, %124 : vector<64x128xf32>
    %c0_50 = arith.constant 0 : index
    %c0_51 = arith.constant 0 : index
    %126 = vector.load %arg1[%c0_50, %c0_51] : memref<64x128xf32, #tpu.memory_space<vmem>>, vector<64x128xf32>
    %127 = arith.addf %126, %125 : vector<64x128xf32>
    %c0_52 = arith.constant 0 : index
    %c0_53 = arith.constant 0 : index
    %128 = vector.load %arg11[%c0_52, %c0_53] : memref<64x128xf32, #tpu.memory_space<vmem>>, vector<64x128xf32>
    tpu.vector_store %arg11[%c0_52, %c0_53], %127 {strides = array<i32>} : memref<64x128xf32, #tpu.memory_space<vmem>>, vector<64x128xf32>,
    return
  }
  func.func @transform_0(%arg0: i32) -> (i32, i32) {
    %c0_i32 = arith.constant 0 : i32
    %c0_i32_0 = arith.constant 0 : i32
    return %arg0, %c0_i32 : i32, i32
  }
  func.func @transform_1(%arg0: i32) -> (i32, i32) {
    %c0_i32 = arith.constant 0 : i32
    %c0_i32_0 = arith.constant 0 : i32
    %c0_i32_1 = arith.constant 0 : i32
    return %c0_i32, %c0_i32_0 : i32, i32
  }
  func.func @transform_2(%arg0: i32) -> (i32, i32) {
    %c0_i32 = arith.constant 0 : i32
    %c0_i32_0 = arith.constant 0 : i32
    %c0_i32_1 = arith.constant 0 : i32
    return %c0_i32, %c0_i32_0 : i32, i32
  }
  func.func @transform_3(%arg0: i32) -> (i32, i32) {
    %c0_i32 = arith.constant 0 : i32
    %c0_i32_0 = arith.constant 0 : i32
    %c0_i32_1 = arith.constant 0 : i32
    return %c0_i32, %c0_i32_0 : i32, i32
  }
  func.func @transform_4(%arg0: i32) -> (i32, i32) {
    %c0_i32 = arith.constant 0 : i32
    %c0_i32_0 = arith.constant 0 : i32
    %c0_i32_1 = arith.constant 0 : i32
    return %c0_i32, %c0_i32_0 : i32, i32
  }
  func.func @transform_5(%arg0: i32) -> (i32, i32) {
    %c0_i32 = arith.constant 0 : i32
    %c0_i32_0 = arith.constant 0 : i32
    %c0_i32_1 = arith.constant 0 : i32
    return %c0_i32, %c0_i32_0 : i32, i32
  }
  func.func @transform_6(%arg0: i32) -> (i32, i32) {
    %c0_i32 = arith.constant 0 : i32
    %c0_i32_0 = arith.constant 0 : i32
    %c0_i32_1 = arith.constant 0 : i32
    return %c0_i32, %c0_i32_0 : i32, i32
  }
  func.func @transform_7(%arg0: i32) -> (i32, i32) {
    %c0_i32 = arith.constant 0 : i32
    %c0_i32_0 = arith.constant 0 : i32
    %c0_i32_1 = arith.constant 0 : i32
    return %c0_i32, %c0_i32_0 : i32, i32
  }
  func.func @transform_8(%arg0: i32) -> (i32, i32) {
    %c0_i32 = arith.constant 0 : i32
    %c0_i32_0 = arith.constant 0 : i32
    %c0_i32_1 = arith.constant 0 : i32
    return %c0_i32, %c0_i32_0 : i32, i32
  }
  func.func @transform_9(%arg0: i32) -> (i32, i32) {
    %c0_i32 = arith.constant 0 : i32
    %c0_i32_0 = arith.constant 0 : i32
    %c0_i32_1 = arith.constant 0 : i32
    return %c0_i32, %c0_i32_0 : i32, i32
  }
  func.func @transform_10(%arg0: i32) -> (i32, i32) {
    %c0_i32 = arith.constant 0 : i32
    %c0_i32_0 = arith.constant 0 : i32
    return %arg0, %c0_i32 : i32, i32
  }
}

</mosaic_0001>

<llo_original>
// kernel: tpu_custom_call.1
$region0: #{tpu_custom_call.1}
  #allocation0 [shape = 'u32[]', space=smem, size = 0x4, offset = 0x4, fixed_abs, tag = 'smem constant byte address 0x4 - core index']
  #allocation1 [shape = 'u32[144,128]{1,0:T(1,128)}', space=vmem, size = 0x12000, scoped, tag = 'internal scratch']
  #allocation2 [shape = 'f32[4,22,128]{2,1,0:T(8,128)}', space=vmem, size = 0xc000, scoped, tag = 'scratch operand']
  %s0 = inlined_call_operand.hbm [shape: f32[64,128], index: 0, kind: input, shape index: {}]
  %s1 = inlined_call_operand.hbm [shape: f32[7,128], index: 1, kind: input, shape index: {}]
  %s2 = inlined_call_operand.vmem [shape: f32[1,128], index: 2, kind: input, shape index: {}]
  %s3 = inlined_call_operand.vmem [shape: f32[1,128], index: 3, kind: input, shape index: {}]
  %s4 = inlined_call_operand.hbm [shape: f32[128,256], index: 4, kind: input, shape index: {}]
  %s5 = inlined_call_operand.vmem [shape: f32[1,256], index: 5, kind: input, shape index: {}]
  %s6 = inlined_call_operand.vmem [shape: f32[1,256], index: 6, kind: input, shape index: {}]
  %s7 = inlined_call_operand.vmem [shape: f32[1,256], index: 7, kind: input, shape index: {}]
  %s8 = inlined_call_operand.hbm [shape: f32[256,128], index: 8, kind: input, shape index: {}]
  %s9 = inlined_call_operand.vmem [shape: f32[1,128], index: 9, kind: input, shape index: {}]
  %s10 = inlined_call_operand.hbm [shape: f32[64,128], index: 10, kind: output, shape index: {}]
  %s11 = sld [smem:[#allocation0]]
  $region66: #{tpu_custom_call.1} parent=0
    _
  %s13 = ssub.s32 1, %s11
  %s14 = scalar_select 0, %s13, %s11
  $region1: #{tpu_custom_call.1} parent=0
    #allocation3 [shape = 'u8[32768]{0}', space=vmem, size = 0x8000, scoped, tag = 'input window, operand 0, single buffered']
    #allocation4 [shape = 's32[1]{0}', space=sflag, size = 0x4, scoped, tag = 'scoped memory for tpu_custom_call.1']
    #allocation5 [shape = 's32[1]{0}', space=sflag, size = 0x4, scoped, tag = 'scoped memory for tpu_custom_call.1']
    #allocation6 [shape = 'u8[4096]{0}', space=vmem, size = 0x1000, scoped, tag = 'input window, operand 1, single buffered']
    #allocation7 [shape = 's32[1]{0}', space=sflag, size = 0x4, scoped, tag = 'scoped memory for tpu_custom_call.1']
    #allocation8 [shape = 'u8[131072]{0}', space=vmem, size = 0x20000, scoped, tag = 'input window, operand 4, single buffered']
    #allocation9 [shape = 'u8[131072]{0}', space=vmem, size = 0x20000, scoped, tag = 'input window, operand 8, single buffered']
    #allocation10 [shape = 's32[1]{0}', space=sflag, size = 0x4, scoped, tag = 'scoped memory for tpu_custom_call.1']
    #allocation11 [shape = 'u8[32768]{0}', space=vmem, size = 0x8000, scoped, tag = 'output window, operand 0, single buffered']
    %15 = vsyncpa [#allocation4], 0
    %16 = vsyncpa [#allocation7], 0
    %17 = vsyncpa [#allocation10], 0
    %18 = vsyncpa [#allocation5], 0
    // Predicated region
    $region2: #{tpu_custom_call.1} parent=1 // pred_check
      _
    $region3: #{tpu_custom_call.1} parent=1 // pred_check_branch
      %20 = sbr.rel (0) target = $region5
    $region4: #{tpu_custom_call.1} parent=1 // pred_region
      %s22 = ssub.s32 1024, 1024
      %23 = vsyncadd [#allocation4], %s22
      %s24 = sshll.u32 [#allocation3], 4
      %s25 = int_to_ptr.vmem [resolvable:$true] %s24
      %30 = dma.hbm_to_vmem [thread:$0]  %s0, 1024, %s25, [#allocation4], 128, 128, 8
    $region5: #{tpu_custom_call.1} parent=1 // pred_fallthru
      _
    // Predicated region
    $region6: #{tpu_custom_call.1} parent=1 // pred_check
      _
    $region7: #{tpu_custom_call.1} parent=1 // pred_check_branch
      %32 = sbr.rel (0) target = $region9
    $region8: #{tpu_custom_call.1} parent=1 // pred_region
      %s34 = ssub.s32 128, 128
      %35 = vsyncadd [#allocation7], %s34
      %s37 = sshll.u32 [#allocation6], 4
      %s38 = int_to_ptr.vmem [resolvable:$true] %s37
      %40 = dma.hbm_to_vmem [thread:$0]  %s1, 128, %s38, [#allocation7]
    $region9: #{tpu_custom_call.1} parent=1 // pred_fallthru
      _
    // Predicated region
    $region10: #{tpu_custom_call.1} parent=1 // pred_check
      _
    $region11: #{tpu_custom_call.1} parent=1 // pred_check_branch
      %42 = sbr.rel (0) target = $region13
    $region12: #{tpu_custom_call.1} parent=1 // pred_region
      _
    $region13: #{tpu_custom_call.1} parent=1 // pred_fallthru
      _
    // Predicated region
    $region14: #{tpu_custom_call.1} parent=1 // pred_check
      _
    $region15: #{tpu_custom_call.1} parent=1 // pred_check_branch
      %44 = sbr.rel (0) target = $region17
    $region16: #{tpu_custom_call.1} parent=1 // pred_region
      _
    $region17: #{tpu_custom_call.1} parent=1 // pred_fallthru
      _
    // Predicated region
    $region18: #{tpu_custom_call.1} parent=1 // pred_check
      _
    $region19: #{tpu_custom_call.1} parent=1 // pred_check_branch
      %46 = sbr.rel (0) target = $region21
    $region20: #{tpu_custom_call.1} parent=1 // pred_region
      %s48 = ssub.s32 4096, 4096
      %49 = vsyncadd [#allocation7], %s48
      %s50 = sshll.u32 [#allocation8], 4
      %s51 = int_to_ptr.vmem [resolvable:$true] %s50
      %56 = dma.hbm_to_vmem [thread:$0]  %s4, 4096, %s51, [#allocation7], 256, 256, 16
    $region21: #{tpu_custom_call.1} parent=1 // pred_fallthru
      _
    // Predicated region
    $region22: #{tpu_custom_call.1} parent=1 // pred_check
      _
    $region23: #{tpu_custom_call.1} parent=1 // pred_check_branch
      %58 = sbr.rel (0) target = $region25
    $region24: #{tpu_custom_call.1} parent=1 // pred_region
      _
    $region25: #{tpu_custom_call.1} parent=1 // pred_fallthru
      _
    // Predicated region
    $region26: #{tpu_custom_call.1} parent=1 // pred_check
      _
    $region27: #{tpu_custom_call.1} parent=1 // pred_check_branch
      %60 = sbr.rel (0) target = $region29
    $region28: #{tpu_custom_call.1} parent=1 // pred_region
      _
    $region29: #{tpu_custom_call.1} parent=1 // pred_fallthru
      _
    // Predicated region
    $region30: #{tpu_custom_call.1} parent=1 // pred_check
      _
    $region31: #{tpu_custom_call.1} parent=1 // pred_check_branch
      %62 = sbr.rel (0) target = $region33
    $region32: #{tpu_custom_call.1} parent=1 // pred_region
      _
    $region33: #{tpu_custom_call.1} parent=1 // pred_fallthru
      _
    // Predicated region
    $region34: #{tpu_custom_call.1} parent=1 // pred_check
      _
    $region35: #{tpu_custom_call.1} parent=1 // pred_check_branch
      %64 = sbr.rel (0) target = $region37
    $region36: #{tpu_custom_call.1} parent=1 // pred_region
      %s66 = ssub.s32 4096, 4096
      %67 = vsyncadd [#allocation10], %s66
      %s68 = sshll.u32 [#allocation9], 4
      %s69 = int_to_ptr.vmem [resolvable:$true] %s68
      %74 = dma.hbm_to_vmem [thread:$0]  %s8, 4096, %s69, [#allocation10], 128, 128, 8
    $region37: #{tpu_custom_call.1} parent=1 // pred_fallthru
      _
    // Predicated region
    $region38: #{tpu_custom_call.1} parent=1 // pred_check
      _
    $region39: #{tpu_custom_call.1} parent=1 // pred_check_branch
      %76 = sbr.rel (0) target = $region41
    $region40: #{tpu_custom_call.1} parent=1 // pred_region
      _
    $region41: #{tpu_custom_call.1} parent=1 // pred_fallthru
      _
    // Predicated region
    $region42: #{tpu_custom_call.1} parent=1 // pred_check
      _
    $region43: #{tpu_custom_call.1} parent=1 // pred_check_branch
      %78 = sbr.rel (0) target = $region45
    $region44: #{tpu_custom_call.1} parent=1 // pred_region
      %79 = dma.done [#allocation4], 1024
    $region45: #{tpu_custom_call.1} parent=1 // pred_fallthru
      _
    // Predicated region
    $region46: #{tpu_custom_call.1} parent=1 // pred_check
      _
    $region47: #{tpu_custom_call.1} parent=1 // pred_check_branch
      %81 = sbr.rel (0) target = $region49
    $region48: #{tpu_custom_call.1} parent=1 // pred_region
      %82 = dma.done [#allocation7], 128
    $region49: #{tpu_custom_call.1} parent=1 // pred_fallthru
      _
    // Predicated region
    $region50: #{tpu_custom_call.1} parent=1 // pred_check
      _
    $region51: #{tpu_custom_call.1} parent=1 // pred_check_branch
      %84 = sbr.rel (0) target = $region53
    $region52: #{tpu_custom_call.1} parent=1 // pred_region
      %85 = dma.done [#allocation7], 4096
    $region53: #{tpu_custom_call.1} parent=1 // pred_fallthru
      _
    // Predicated region
    $region54: #{tpu_custom_call.1} parent=1 // pred_check
      _
    $region55: #{tpu_custom_call.1} parent=1 // pred_check_branch
      %87 = sbr.rel (0) target = $region57
    $region56: #{tpu_custom_call.1} parent=1 // pred_region
      %88 = dma.done [#allocation10], 4096
    $region57: #{tpu_custom_call.1} parent=1 // pred_fallthru
      _
    %v89 = vld [vmem:[#allocation3] sm:$0xff]
    %v90 = vld [vmem:[#allocation3 + $0x8] sm:$0xff]
    %v91 = vld [vmem:[#allocation3 + $0x10] sm:$0xff]
    %v92 = vld [vmem:[#allocation3 + $0x18] sm:$0xff]
    %v93 = vld [vmem:[#allocation3 + $0x20] sm:$0xff]
    %v94 = vld [vmem:[#allocation3 + $0x28] sm:$0xff]
    %v95 = vld [vmem:[#allocation3 + $0x30] sm:$0xff]
    %v96 = vld [vmem:[#allocation3 + $0x38] sm:$0xff]
    %97 = vst [vmem:[#allocation2] sm:$0xff] %v89
    %98 = vst [vmem:[#allocation2 + $0x8] sm:$0xff] %v90
    %99 = vst [vmem:[#allocation2 + $0x18] sm:$0xff] %v91
    %100 = vst [vmem:[#allocation2 + $0x20] sm:$0xff] %v92
    %101 = vst [vmem:[#allocation2 + $0x30] sm:$0xff] %v93
    %102 = vst [vmem:[#allocation2 + $0x38] sm:$0xff] %v94
    %103 = vst [vmem:[#allocation2 + $0x48] sm:$0xff] %v95
    %104 = vst [vmem:[#allocation2 + $0x50] sm:$0xff] %v96
    %105 = vst [vmem:[#allocation2 + $0xa] sm:$0x40] %v90
    %106 = vst [vmem:[#allocation2 + $0x22] sm:$0x40] %v92
    %107 = vst [vmem:[#allocation2 + $0x3a] sm:$0x40] %v94
    %108 = vst [vmem:[#allocation2 + $0x52] sm:$0x40] %v96
    %109 = vst [vmem:[#allocation2 + $0xc] sm:$0x20] %v90
    %110 = vst [vmem:[#allocation2 + $0x24] sm:$0x20] %v92
    %111 = vst [vmem:[#allocation2 + $0x3c] sm:$0x20] %v94
    %112 = vst [vmem:[#allocation2 + $0x54] sm:$0x20] %v96
    %113 = vst [vmem:[#allocation2 + $0xe] sm:$0x10] %v90
    %114 = vst [vmem:[#allocation2 + $0x26] sm:$0x10] %v92
    %115 = vst [vmem:[#allocation2 + $0x3e] sm:$0x10] %v94
    %116 = vst [vmem:[#allocation2 + $0x56] sm:$0x10] %v96
    %117 = vst [vmem:[#allocation2 + $0x10] sm:$0x8] %v90
    %118 = vst [vmem:[#allocation2 + $0x28] sm:$0x8] %v92
    %119 = vst [vmem:[#allocation2 + $0x40] sm:$0x8] %v94
    %120 = vst [vmem:[#allocation2 + $0x58] sm:$0x8] %v96
    %121 = vst [vmem:[#allocation2 + $0x12] sm:$0x4] %v90
    %122 = vst [vmem:[#allocation2 + $0x2a] sm:$0x4] %v92
    %123 = vst [vmem:[#allocation2 + $0x42] sm:$0x4] %v94
    %124 = vst [vmem:[#allocation2 + $0x5a] sm:$0x4] %v96
    %125 = vst [vmem:[#allocation2 + $0x14] sm:$0x2] %v90
    %126 = vst [vmem:[#allocation2 + $0x2c] sm:$0x2] %v92
    %127 = vst [vmem:[#allocation2 + $0x44] sm:$0x2] %v94
    %128 = vst [vmem:[#allocation2 + $0x5c] sm:$0x2] %v96
    %v129 = vld [vmem:[#allocation2] sm:$0xff]
    %v130 = vld [vmem:[#allocation2 + $0x8] sm:$0xff]
    %v131 = vld [vmem:[#allocation2 + $0x10] sm:$0x3f]
    %v132 = vld [vmem:[#allocation2 + $0x18] sm:$0xff]
    %v133 = vld [vmem:[#allocation2 + $0x20] sm:$0xff]
    %v134 = vld [vmem:[#allocation2 + $0x28] sm:$0x3f]
    %v135 = vld [vmem:[#allocation2 + $0x30] sm:$0xff]
    %v136 = vld [vmem:[#allocation2 + $0x38] sm:$0xff]
    %v137 = vld [vmem:[#allocation2 + $0x40] sm:$0x3f]
    %v138 = vld [vmem:[#allocation2 + $0x48] sm:$0xff]
    %v139 = vld [vmem:[#allocation2 + $0x50] sm:$0xff]
    %v140 = vld [vmem:[#allocation2 + $0x58] sm:$0x3f]
    %v141 = vld [vmem:[#allocation6] sm:$0x7f]
    %v142 = vlaneseq
    %v143 = vshrl.u32 %v142, 7
    %v144 = vsub.s32 0, %v143
    %v145 = vrot.slane %v141, %v144
    %v146 = vmul.f32 %v129, %v145
    %v147 = vmul.f32 %v130, %v145
    %v148 = vmul.f32 %v132, %v145
    %v149 = vmul.f32 %v133, %v145
    %v150 = vmul.f32 %v135, %v145
    %v151 = vmul.f32 %v136, %v145
    %v152 = vmul.f32 %v138, %v145
    %v153 = vmul.f32 %v139, %v145
    %v154 = vlaneseq
    %v155 = vshrl.u32 %v154, 7
    %v156 = vsub.s32 1, %v155
    %v157 = vrot.slane %v141, %v156
    %v158 = vmul.f32 %v129, %v157
    %v159 = vmul.f32 %v130, %v157
    %v160 = vmul.f32 %v131, %v157
    %v161 = vmul.f32 %v132, %v157
    %v162 = vmul.f32 %v133, %v157
    %v163 = vmul.f32 %v134, %v157
    %v164 = vmul.f32 %v135, %v157
    %v165 = vmul.f32 %v136, %v157
    %v166 = vmul.f32 %v137, %v157
    %v167 = vmul.f32 %v138, %v157
    %v168 = vmul.f32 %v139, %v157
    %v169 = vmul.f32 %v140, %v157
    %vm182 = vcmask 1046528
    %v183 = vrot.slane %v158, 1
    %v184 = vrot.slane %v159, 1
    %v185 = vsel %vm182, %v183, %v184
    %v186 = vrot.slane %v160, 1
    %v187 = vsel %vm182, %v184, %v186
    %v188 = vrot.slane %v161, 1
    %v189 = vrot.slane %v162, 1
    %v190 = vsel %vm182, %v188, %v189
    %v191 = vrot.slane %v163, 1
    %v192 = vsel %vm182, %v189, %v191
    %v193 = vrot.slane %v164, 1
    %v194 = vrot.slane %v165, 1
    %v195 = vsel %vm182, %v193, %v194
    %v196 = vrot.slane %v166, 1
    %v197 = vsel %vm182, %v194, %v196
    %v198 = vrot.slane %v167, 1
    %v199 = vrot.slane %v168, 1
    %v200 = vsel %vm182, %v198, %v199
    %v201 = vrot.slane %v169, 1
    %v202 = vsel %vm182, %v199, %v201
    %v211 = vadd.f32 %v146, %v185
    %v212 = vadd.f32 %v147, %v187
    %v213 = vadd.f32 %v148, %v190
    %v214 = vadd.f32 %v149, %v192
    %v215 = vadd.f32 %v150, %v195
    %v216 = vadd.f32 %v151, %v197
    %v217 = vadd.f32 %v152, %v200
    %v218 = vadd.f32 %v153, %v202
    %v219 = vlaneseq
    %v220 = vshrl.u32 %v219, 7
    %v221 = vsub.s32 2, %v220
    %v222 = vrot.slane %v141, %v221
    %v223 = vmul.f32 %v129, %v222
    %v224 = vmul.f32 %v130, %v222
    %v225 = vmul.f32 %v131, %v222
    %v226 = vmul.f32 %v132, %v222
    %v227 = vmul.f32 %v133, %v222
    %v228 = vmul.f32 %v134, %v222
    %v229 = vmul.f32 %v135, %v222
    %v230 = vmul.f32 %v136, %v222
    %v231 = vmul.f32 %v137, %v222
    %v232 = vmul.f32 %v138, %v222
    %v233 = vmul.f32 %v139, %v222
    %v234 = vmul.f32 %v140, %v222
    %vm247 = vcmask 1045504
    %v248 = vrot.slane %v223, 2
    %v249 = vrot.slane %v224, 2
    %v250 = vsel %vm247, %v248, %v249
    %v251 = vrot.slane %v225, 2
    %v252 = vsel %vm247, %v249, %v251
    %v253 = vrot.slane %v226, 2
    %v254 = vrot.slane %v227, 2
    %v255 = vsel %vm247, %v253, %v254
    %v256 = vrot.slane %v228, 2
    %v257 = vsel %vm247, %v254, %v256
    %v258 = vrot.slane %v229, 2
    %v259 = vrot.slane %v230, 2
    %v260 = vsel %vm247, %v258, %v259
    %v261 = vrot.slane %v231, 2
    %v262 = vsel %vm247, %v259, %v261
    %v263 = vrot.slane %v232, 2
    %v264 = vrot.slane %v233, 2
    %v265 = vsel %vm247, %v263, %v264
    %v266 = vrot.slane %v234, 2
    %v267 = vsel %vm247, %v264, %v266
    %v276 = vadd.f32 %v211, %v250
    %v277 = vadd.f32 %v212, %v252
    %v278 = vadd.f32 %v213, %v255
    %v279 = vadd.f32 %v214, %v257
    %v280 = vadd.f32 %v215, %v260
    %v281 = vadd.f32 %v216, %v262
    %v282 = vadd.f32 %v217, %v265
    %v283 = vadd.f32 %v218, %v267
    %v284 = vlaneseq
    %v285 = vshrl.u32 %v284, 7
    %v286 = vsub.s32 3, %v285
    %v287 = vrot.slane %v141, %v286
    %v288 = vmul.f32 %v129, %v287
    %v289 = vmul.f32 %v130, %v287
    %v290 = vmul.f32 %v131, %v287
    %v291 = vmul.f32 %v132, %v287
    %v292 = vmul.f32 %v133, %v287
    %v293 = vmul.f32 %v134, %v287
    %v294 = vmul.f32 %v135, %v287
    %v295 = vmul.f32 %v136, %v287
    %v296 = vmul.f32 %v137, %v287
    %v297 = vmul.f32 %v138, %v287
    %v298 = vmul.f32 %v139, %v287
    %v299 = vmul.f32 %v140, %v287
    %vm312 = vcmask 1044480
    %v313 = vrot.slane %v288, 3
    %v314 = vrot.slane %v289, 3
    %v315 = vsel %vm312, %v313, %v314
    %v316 = vrot.slane %v290, 3
    %v317 = vsel %vm312, %v314, %v316
    %v318 = vrot.slane %v291, 3
    %v319 = vrot.slane %v292, 3
    %v320 = vsel %vm312, %v318, %v319
    %v321 = vrot.slane %v293, 3
    %v322 = vsel %vm312, %v319, %v321
    %v323 = vrot.slane %v294, 3
    %v324 = vrot.slane %v295, 3
    %v325 = vsel %vm312, %v323, %v324
    %v326 = vrot.slane %v296, 3
    %v327 = vsel %vm312, %v324, %v326
    %v328 = vrot.slane %v297, 3
    %v329 = vrot.slane %v298, 3
    %v330 = vsel %vm312, %v328, %v329
    %v331 = vrot.slane %v299, 3
    %v332 = vsel %vm312, %v329, %v331
    %v341 = vadd.f32 %v276, %v315
    %v342 = vadd.f32 %v277, %v317
    %v343 = vadd.f32 %v278, %v320
    %v344 = vadd.f32 %v279, %v322
    %v345 = vadd.f32 %v280, %v325
    %v346 = vadd.f32 %v281, %v327
    %v347 = vadd.f32 %v282, %v330
    %v348 = vadd.f32 %v283, %v332
    %v349 = vlaneseq
    %v350 = vshrl.u32 %v349, 7
    %v351 = vsub.s32 4, %v350
    %v352 = vrot.slane %v141, %v351
    %v353 = vmul.f32 %v129, %v352
    %v354 = vmul.f32 %v130, %v352
    %v355 = vmul.f32 %v131, %v352
    %v356 = vmul.f32 %v132, %v352
    %v357 = vmul.f32 %v133, %v352
    %v358 = vmul.f32 %v134, %v352
    %v359 = vmul.f32 %v135, %v352
    %v360 = vmul.f32 %v136, %v352
    %v361 = vmul.f32 %v137, %v352
    %v362 = vmul.f32 %v138, %v352
    %v363 = vmul.f32 %v139, %v352
    %v364 = vmul.f32 %v140, %v352
    %vm377 = vcmask 1043456
    %v378 = vrot.slane %v353, 4
    %v379 = vrot.slane %v354, 4
    %v380 = vsel %vm377, %v378, %v379
    %v381 = vrot.slane %v355, 4
    %v382 = vsel %vm377, %v379, %v381
    %v383 = vrot.slane %v356, 4
    %v384 = vrot.slane %v357, 4
    %v385 = vsel %vm377, %v383, %v384
    %v386 = vrot.slane %v358, 4
    %v387 = vsel %vm377, %v384, %v386
    %v388 = vrot.slane %v359, 4
    %v389 = vrot.slane %v360, 4
    %v390 = vsel %vm377, %v388, %v389
    %v391 = vrot.slane %v361, 4
    %v392 = vsel %vm377, %v389, %v391
    %v393 = vrot.slane %v362, 4
    %v394 = vrot.slane %v363, 4
    %v395 = vsel %vm377, %v393, %v394
    %v396 = vrot.slane %v364, 4
    %v397 = vsel %vm377, %v394, %v396
    %v406 = vadd.f32 %v341, %v380
    %v407 = vadd.f32 %v342, %v382
    %v408 = vadd.f32 %v343, %v385
    %v409 = vadd.f32 %v344, %v387
    %v410 = vadd.f32 %v345, %v390
    %v411 = vadd.f32 %v346, %v392
    %v412 = vadd.f32 %v347, %v395
    %v413 = vadd.f32 %v348, %v397
    %v414 = vlaneseq
    %v415 = vshrl.u32 %v414, 7
    %v416 = vsub.s32 5, %v415
    %v417 = vrot.slane %v141, %v416
    %v418 = vmul.f32 %v129, %v417
    %v419 = vmul.f32 %v130, %v417
    %v420 = vmul.f32 %v131, %v417
    %v421 = vmul.f32 %v132, %v417
    %v422 = vmul.f32 %v133, %v417
    %v423 = vmul.f32 %v134, %v417
    %v424 = vmul.f32 %v135, %v417
    %v425 = vmul.f32 %v136, %v417
    %v426 = vmul.f32 %v137, %v417
    %v427 = vmul.f32 %v138, %v417
    %v428 = vmul.f32 %v139, %v417
    %v429 = vmul.f32 %v140, %v417
    %vm442 = vcmask 1042432
    %v443 = vrot.slane %v418, 5
    %v444 = vrot.slane %v419, 5
    %v445 = vsel %vm442, %v443, %v444
    %v446 = vrot.slane %v420, 5
    %v447 = vsel %vm442, %v444, %v446
    %v448 = vrot.slane %v421, 5
    %v449 = vrot.slane %v422, 5
    %v450 = vsel %vm442, %v448, %v449
    %v451 = vrot.slane %v423, 5
    %v452 = vsel %vm442, %v449, %v451
    %v453 = vrot.slane %v424, 5
    %v454 = vrot.slane %v425, 5
    %v455 = vsel %vm442, %v453, %v454
    %v456 = vrot.slane %v426, 5
    %v457 = vsel %vm442, %v454, %v456
    %v458 = vrot.slane %v427, 5
    %v459 = vrot.slane %v428, 5
    %v460 = vsel %vm442, %v458, %v459
    %v461 = vrot.slane %v429, 5
    %v462 = vsel %vm442, %v459, %v461
    %v471 = vadd.f32 %v406, %v445
    %v472 = vadd.f32 %v407, %v447
    %v473 = vadd.f32 %v408, %v450
    %v474 = vadd.f32 %v409, %v452
    %v475 = vadd.f32 %v410, %v455
    %v476 = vadd.f32 %v411, %v457
    %v477 = vadd.f32 %v412, %v460
    %v478 = vadd.f32 %v413, %v462
    %v479 = vlaneseq
    %v480 = vshrl.u32 %v479, 7
    %v481 = vsub.s32 6, %v480
    %v482 = vrot.slane %v141, %v481
    %v483 = vmul.f32 %v129, %v482
    %v484 = vmul.f32 %v130, %v482
    %v485 = vmul.f32 %v131, %v482
    %v486 = vmul.f32 %v132, %v482
    %v487 = vmul.f32 %v133, %v482
    %v488 = vmul.f32 %v134, %v482
    %v489 = vmul.f32 %v135, %v482
    %v490 = vmul.f32 %v136, %v482
    %v491 = vmul.f32 %v137, %v482
    %v492 = vmul.f32 %v138, %v482
    %v493 = vmul.f32 %v139, %v482
    %v494 = vmul.f32 %v140, %v482
    %vm507 = vcmask 1041408
    %v508 = vrot.slane %v483, 6
    %v509 = vrot.slane %v484, 6
    %v510 = vsel %vm507, %v508, %v509
    %v511 = vrot.slane %v485, 6
    %v512 = vsel %vm507, %v509, %v511
    %v513 = vrot.slane %v486, 6
    %v514 = vrot.slane %v487, 6
    %v515 = vsel %vm507, %v513, %v514
    %v516 = vrot.slane %v488, 6
    %v517 = vsel %vm507, %v514, %v516
    %v518 = vrot.slane %v489, 6
    %v519 = vrot.slane %v490, 6
    %v520 = vsel %vm507, %v518, %v519
    %v521 = vrot.slane %v491, 6
    %v522 = vsel %vm507, %v519, %v521
    %v523 = vrot.slane %v492, 6
    %v524 = vrot.slane %v493, 6
    %v525 = vsel %vm507, %v523, %v524
    %v526 = vrot.slane %v494, 6
    %v527 = vsel %vm507, %v524, %v526
    %v536 = vadd.f32 %v471, %v510
    %v537 = vadd.f32 %v472, %v512
    %v538 = vadd.f32 %v473, %v515
    %v539 = vadd.f32 %v474, %v517
    %v540 = vadd.f32 %v475, %v520
    %v541 = vadd.f32 %v476, %v522
    %v542 = vadd.f32 %v477, %v525
    %v543 = vadd.f32 %v478, %v527
    %544 = vadd.xlane.f32.xlu0 %v536
    %v545 = vpop.xlane.xlu0 %544
    %546 = vadd.xlane.f32.xlu0 %v537
    %v547 = vpop.xlane.xlu0 %546
    %548 = vadd.xlane.f32.xlu0 %v538
    %v549 = vpop.xlane.xlu0 %548
    %550 = vadd.xlane.f32.xlu0 %v539
    %v551 = vpop.xlane.xlu0 %550
    %552 = vadd.xlane.f32.xlu0 %v540
    %v553 = vpop.xlane.xlu0 %552
    %554 = vadd.xlane.f32.xlu0 %v541
    %v555 = vpop.xlane.xlu0 %554
    %556 = vadd.xlane.f32.xlu0 %v542
    %v557 = vpop.xlane.xlu0 %556
    %558 = vadd.xlane.f32.xlu0 %v543
    %v559 = vpop.xlane.xlu0 %558
    %v560 = vrcp.pop 128.0
    %v561 = vmul.f32 %v545, %v560
    %v562 = vmul.f32 %v547, %v560
    %v563 = vmul.f32 %v549, %v560
    %v564 = vmul.f32 %v551, %v560
    %v565 = vmul.f32 %v553, %v560
    %v566 = vmul.f32 %v555, %v560
    %v567 = vmul.f32 %v557, %v560
    %v568 = vmul.f32 %v559, %v560
    %v569 = vsub.f32 %v536, %v561
    %v570 = vsub.f32 %v537, %v562
    %v571 = vsub.f32 %v538, %v563
    %v572 = vsub.f32 %v539, %v564
    %v573 = vsub.f32 %v540, %v565
    %v574 = vsub.f32 %v541, %v566
    %v575 = vsub.f32 %v542, %v567
    %v576 = vsub.f32 %v543, %v568
    %v577 = vmul.f32 %v569, %v569
    %v578 = vmul.f32 %v570, %v570
    %v579 = vmul.f32 %v571, %v571
    %v580 = vmul.f32 %v572, %v572
    %v581 = vmul.f32 %v573, %v573
    %v582 = vmul.f32 %v574, %v574
    %v583 = vmul.f32 %v575, %v575
    %v584 = vmul.f32 %v576, %v576
    %585 = vadd.xlane.f32.xlu0 %v577
    %v586 = vpop.xlane.xlu0 %585
    %587 = vadd.xlane.f32.xlu0 %v578
    %v588 = vpop.xlane.xlu0 %587
    %589 = vadd.xlane.f32.xlu0 %v579
    %v590 = vpop.xlane.xlu0 %589
    %591 = vadd.xlane.f32.xlu0 %v580
    %v592 = vpop.xlane.xlu0 %591
    %593 = vadd.xlane.f32.xlu0 %v581
    %v594 = vpop.xlane.xlu0 %593
    %595 = vadd.xlane.f32.xlu0 %v582
    %v596 = vpop.xlane.xlu0 %595
    %597 = vadd.xlane.f32.xlu0 %v583
    %v598 = vpop.xlane.xlu0 %597
    %599 = vadd.xlane.f32.xlu0 %v584
    %v600 = vpop.xlane.xlu0 %599
    %v601 = vmul.f32 %v586, %v560
    %v602 = vmul.f32 %v588, %v560
    %v603 = vmul.f32 %v590, %v560
    %v604 = vmul.f32 %v592, %v560
    %v605 = vmul.f32 %v594, %v560
    %v606 = vmul.f32 %v596, %v560
    %v607 = vmul.f32 %v598, %v560
    %v608 = vmul.f32 %v600, %v560
    %v609 = vadd.f32 %v601, 1e-05
    %v610 = vadd.f32 %v602, 1e-05
    %v611 = vadd.f32 %v603, 1e-05
    %v612 = vadd.f32 %v604, 1e-05
    %v613 = vadd.f32 %v605, 1e-05
    %v614 = vadd.f32 %v606, 1e-05
    %v615 = vadd.f32 %v607, 1e-05
    %v616 = vadd.f32 %v608, 1e-05
    %v617 = vrsqrt.pop %v609
    %v618 = vrsqrt.pop %v610
    %v619 = vrsqrt.pop %v611
    %v620 = vrsqrt.pop %v612
    %v621 = vrsqrt.pop %v613
    %v622 = vrsqrt.pop %v614
    %v623 = vrsqrt.pop %v615
    %v624 = vrsqrt.pop %v616
    %v625 = vmul.f32 %v569, %v617
    %v626 = vmul.f32 %v570, %v618
    %v627 = vmul.f32 %v571, %v619
    %v628 = vmul.f32 %v572, %v620
    %v629 = vmul.f32 %v573, %v621
    %v630 = vmul.f32 %v574, %v622
    %v631 = vmul.f32 %v575, %v623
    %v632 = vmul.f32 %v576, %v624
    %v633 = vld [vmem:[%s2] sm:$0x1]
    %v635 = vlaneseq
    %v636 = vshrl.u32 %v635, 7
    %v637 = vsub.s32 0, %v636
    %v638 = vrot.slane %v633, %v637
    %v640 = vmul.f32 %v625, %v638
    %v641 = vmul.f32 %v626, %v638
    %v642 = vmul.f32 %v627, %v638
    %v643 = vmul.f32 %v628, %v638
    %v644 = vmul.f32 %v629, %v638
    %v645 = vmul.f32 %v630, %v638
    %v646 = vmul.f32 %v631, %v638
    %v647 = vmul.f32 %v632, %v638
    %v648 = vld [vmem:[%s3] sm:$0x1]
    %v650 = vlaneseq
    %v651 = vshrl.u32 %v650, 7
    %v652 = vsub.s32 0, %v651
    %v653 = vrot.slane %v648, %v652
    %v655 = vadd.f32 %v640, %v653
    %v656 = vadd.f32 %v641, %v653
    %v657 = vadd.f32 %v642, %v653
    %v658 = vadd.f32 %v643, %v653
    %v659 = vadd.f32 %v644, %v653
    %v660 = vadd.f32 %v645, %v653
    %v661 = vadd.f32 %v646, %v653
    %v662 = vadd.f32 %v647, %v653
    %v663 = vld [vmem:[#allocation8] sm:$0xff]
    %v664 = vld [vmem:[#allocation8 + $0x8] sm:$0xff]
    %v665 = vld [vmem:[#allocation8 + $0x10] sm:$0xff]
    %v666 = vld [vmem:[#allocation8 + $0x18] sm:$0xff]
    %v667 = vld [vmem:[#allocation8 + $0x20] sm:$0xff]
    %v668 = vld [vmem:[#allocation8 + $0x28] sm:$0xff]
    %v669 = vld [vmem:[#allocation8 + $0x30] sm:$0xff]
    %v670 = vld [vmem:[#allocation8 + $0x38] sm:$0xff]
    %v671 = vld [vmem:[#allocation8 + $0x40] sm:$0xff]
    %v672 = vld [vmem:[#allocation8 + $0x48] sm:$0xff]
    %v673 = vld [vmem:[#allocation8 + $0x50] sm:$0xff]
    %v674 = vld [vmem:[#allocation8 + $0x58] sm:$0xff]
    %v675 = vld [vmem:[#allocation8 + $0x60] sm:$0xff]
    %v676 = vld [vmem:[#allocation8 + $0x68] sm:$0xff]
    %v677 = vld [vmem:[#allocation8 + $0x70] sm:$0xff]
    %v678 = vld [vmem:[#allocation8 + $0x78] sm:$0xff]
    %v679 = vld [vmem:[#allocation8 + $0x80] sm:$0xff]
    %v680 = vld [vmem:[#allocation8 + $0x88] sm:$0xff]
    %v681 = vld [vmem:[#allocation8 + $0x90] sm:$0xff]
    %v682 = vld [vmem:[#allocation8 + $0x98] sm:$0xff]
    %v683 = vld [vmem:[#allocation8 + $0xa0] sm:$0xff]
    %v684 = vld [vmem:[#allocation8 + $0xa8] sm:$0xff]
    %v685 = vld [vmem:[#allocation8 + $0xb0] sm:$0xff]
    %v686 = vld [vmem:[#allocation8 + $0xb8] sm:$0xff]
    %v687 = vld [vmem:[#allocation8 + $0xc0] sm:$0xff]
    %v688 = vld [vmem:[#allocation8 + $0xc8] sm:$0xff]
    %v689 = vld [vmem:[#allocation8 + $0xd0] sm:$0xff]
    %v690 = vld [vmem:[#allocation8 + $0xd8] sm:$0xff]
    %v691 = vld [vmem:[#allocation8 + $0xe0] sm:$0xff]
    %v692 = vld [vmem:[#allocation8 + $0xe8] sm:$0xff]
    %v693 = vld [vmem:[#allocation8 + $0xf0] sm:$0xff]
    %v694 = vld [vmem:[#allocation8 + $0xf8] sm:$0xff]
    %v695 = vld [vmem:[%s5] sm:$0x3]
    %v697 = vlaneseq
    %v698 = vshrl.u32 %v697, 7
    %v699 = vsub.s32 0, %v698
    %v700 = vrot.slane %v695, %v699
    %v701 = vlaneseq
    %v702 = vshrl.u32 %v701, 7
    %v703 = vsub.s32 1, %v702
    %v704 = vrot.slane %v695, %v703
    %707 = vmatprep.subr.mxu0 %v664
    %708 = vmatpush1.msra.mxu0 %v663
    %709 = vmatprep.subr.mxu0 %v666
    %710 = vmatpush1.msra.mxu0 %v665
    %711 = vmatprep.subr.mxu0 %v668
    %712 = vmatpush1.msra.mxu0 %v667
    %713 = vmatprep.subr.mxu0 %v670
    %714 = vmatpush1.msra.mxu0 %v669
    %715 = vmatprep.subr.mxu0 %v672
    %716 = vmatpush1.msra.mxu0 %v671
    %717 = vmatprep.subr.mxu0 %v674
    %718 = vmatpush1.msra.mxu0 %v673
    %719 = vmatprep.subr.mxu0 %v676
    %720 = vmatpush1.msra.mxu0 %v675
    %721 = vmatprep.subr.mxu0 %v678
    %722 = vmatpush1.msra.mxu0 %v677
    %723 = vmatprep.subr.mxu0 %v680
    %724 = vmatpush1.msra.mxu0 %v679
    %725 = vmatprep.subr.mxu0 %v682
    %726 = vmatpush1.msra.mxu0 %v681
    %727 = vmatprep.subr.mxu0 %v684
    %728 = vmatpush1.msra.mxu0 %v683
    %729 = vmatprep.subr.mxu0 %v686
    %730 = vmatpush1.msra.mxu0 %v685
    %731 = vmatprep.subr.mxu0 %v688
    %732 = vmatpush1.msra.mxu0 %v687
    %733 = vmatprep.subr.mxu0 %v690
    %734 = vmatpush1.msra.mxu0 %v689
    %735 = vmatprep.subr.mxu0 %v692
    %736 = vmatpush1.msra.mxu0 %v691
    %737 = vmatprep.subr.mxu0 %v694
    %738 = vmatpush1.msra.mxu0 %v693
    %739 = vmatprep.subr.mxu0 0.0
    %740 = vmatpush1.msra.mxu0 0.0
    %741 = vmatprep.subr.mxu0 0.0
    %742 = vmatpush1.msra.mxu0 0.0
    %743 = vmatprep.subr.mxu0 0.0
    %744 = vmatpush1.msra.mxu0 0.0
    %745 = vmatprep.subr.mxu0 0.0
    %746 = vmatpush1.msra.mxu0 0.0
    %747 = vmatprep.subr.mxu0 0.0
    %748 = vmatpush1.msra.mxu0 0.0
    %749 = vmatprep.subr.mxu0 0.0
    %750 = vmatpush1.msra.mxu0 0.0
    %751 = vmatprep.subr.mxu0 0.0
    %752 = vmatpush1.msra.mxu0 0.0
    %753 = vmatprep.subr.mxu0 0.0
    %754 = vmatpush1.msra.mxu0 0.0
    %755 = vmatprep.subr.mxu0 0.0
    %756 = vmatpush1.msra.mxu0 0.0
    %757 = vmatprep.subr.mxu0 0.0
    %758 = vmatpush1.msra.mxu0 0.0
    %759 = vmatprep.subr.mxu0 0.0
    %760 = vmatpush1.msra.mxu0 0.0
    %761 = vmatprep.subr.mxu0 0.0
    %762 = vmatpush1.msra.mxu0 0.0
    %763 = vmatprep.subr.mxu0 0.0
    %764 = vmatpush1.msra.mxu0 0.0
    %765 = vmatprep.subr.mxu0 0.0
    %766 = vmatpush1.msra.mxu0 0.0
    %767 = vmatprep.subr.mxu0 0.0
    %768 = vmatpush1.msra.mxu0 0.0
    %769 = vmatprep.subr.mxu0 0.0
    %770 = vmatpush1.msra.mxu0 0.0
    %771 = vmatprep.mubr.f32.mxu0 0.0
    %772 = vmatmul.mubr.f32.gmra.mrb[0].mxu0 %v655
    %v773 = vpop.f32.mrb[0].mxu0
    %v774 = vadd.f32 %v700, %v773
    %v775 = vpop.f32.mrb[0].mxu0
    %v776 = vadd.f32 %v704, %v775
    %777 = vmatprep.mubr.f32.mxu0 0.0
    %778 = vmatmul.mubr.f32.gmra.mrb[0].mxu0 %v656
    %v779 = vpop.f32.mrb[0].mxu0
    %v780 = vadd.f32 %v700, %v779
    %v781 = vpop.f32.mrb[0].mxu0
    %v782 = vadd.f32 %v704, %v781
    %783 = vmatprep.mubr.f32.mxu0 0.0
    %784 = vmatmul.mubr.f32.gmra.mrb[0].mxu0 %v657
    %v785 = vpop.f32.mrb[0].mxu0
    %v786 = vadd.f32 %v700, %v785
    %v787 = vpop.f32.mrb[0].mxu0
    %v788 = vadd.f32 %v704, %v787
    %789 = vmatprep.mubr.f32.mxu0 0.0
    %790 = vmatmul.mubr.f32.gmra.mrb[0].mxu0 %v658
    %v791 = vpop.f32.mrb[0].mxu0
    %v792 = vadd.f32 %v700, %v791
    %v793 = vpop.f32.mrb[0].mxu0
    %v794 = vadd.f32 %v704, %v793
    %795 = vmatprep.mubr.f32.mxu0 0.0
    %796 = vmatmul.mubr.f32.gmra.mrb[0].mxu0 %v659
    %v797 = vpop.f32.mrb[0].mxu0
    %v798 = vadd.f32 %v700, %v797
    %v799 = vpop.f32.mrb[0].mxu0
    %v800 = vadd.f32 %v704, %v799
    %801 = vmatprep.mubr.f32.mxu0 0.0
    %802 = vmatmul.mubr.f32.gmra.mrb[0].mxu0 %v660
    %v803 = vpop.f32.mrb[0].mxu0
    %v804 = vadd.f32 %v700, %v803
    %v805 = vpop.f32.mrb[0].mxu0
    %v806 = vadd.f32 %v704, %v805
    %807 = vmatprep.mubr.f32.mxu0 0.0
    %808 = vmatmul.mubr.f32.gmra.mrb[0].mxu0 %v661
    %v809 = vpop.f32.mrb[0].mxu0
    %v810 = vadd.f32 %v700, %v809
    %v811 = vpop.f32.mrb[0].mxu0
    %v812 = vadd.f32 %v704, %v811
    %813 = vmatprep.mubr.f32.mxu0 0.0
    %814 = vmatmul.mubr.f32.gmra.mrb[0].mxu0 %v662
    %v815 = vpop.f32.mrb[0].mxu0
    %v816 = vadd.f32 %v700, %v815
    %v817 = vpop.f32.mrb[0].mxu0
    %v818 = vadd.f32 %v704, %v817
    %819 = vdwg.mxu0
    %v820 = vmul.f32 %v774, 0.5
    %v821 = vmul.f32 %v776, 0.5
    %v822 = vmul.f32 %v780, 0.5
    %v823 = vmul.f32 %v782, 0.5
    %v824 = vmul.f32 %v786, 0.5
    %v825 = vmul.f32 %v788, 0.5
    %v826 = vmul.f32 %v792, 0.5
    %v827 = vmul.f32 %v794, 0.5
    %v828 = vmul.f32 %v798, 0.5
    %v829 = vmul.f32 %v800, 0.5
    %v830 = vmul.f32 %v804, 0.5
    %v831 = vmul.f32 %v806, 0.5
    %v832 = vmul.f32 %v810, 0.5
    %v833 = vmul.f32 %v812, 0.5
    %v834 = vmul.f32 %v816, 0.5
    %v835 = vmul.f32 %v818, 0.5
    %v836 = vmul.f32 %v774, 0.70710677
    %v837 = vmul.f32 %v776, 0.70710677
    %v838 = vmul.f32 %v780, 0.70710677
    %v839 = vmul.f32 %v782, 0.70710677
    %v840 = vmul.f32 %v786, 0.70710677
    %v841 = vmul.f32 %v788, 0.70710677
    %v842 = vmul.f32 %v792, 0.70710677
    %v843 = vmul.f32 %v794, 0.70710677
    %v844 = vmul.f32 %v798, 0.70710677
    %v845 = vmul.f32 %v800, 0.70710677
    %v846 = vmul.f32 %v804, 0.70710677
    %v847 = vmul.f32 %v806, 0.70710677
    %v848 = vmul.f32 %v810, 0.70710677
    %v849 = vmul.f32 %v812, 0.70710677
    %v850 = vmul.f32 %v816, 0.70710677
    %v851 = vmul.f32 %v818, 0.70710677
    %v852 = verf.f32.pop %v836
    %v853 = verf.f32.pop %v837
    %v854 = verf.f32.pop %v838
    %v855 = verf.f32.pop %v839
    %v856 = verf.f32.pop %v840
    %v857 = verf.f32.pop %v841
    %v858 = verf.f32.pop %v842
    %v859 = verf.f32.pop %v843
    %v860 = verf.f32.pop %v844
    %v861 = verf.f32.pop %v845
    %v862 = verf.f32.pop %v846
    %v863 = verf.f32.pop %v847
    %v864 = verf.f32.pop %v848
    %v865 = verf.f32.pop %v849
    %v866 = verf.f32.pop %v850
    %v867 = verf.f32.pop %v851
    %v868 = vadd.f32 %v852, 1.0
    %v869 = vadd.f32 %v853, 1.0
    %v870 = vadd.f32 %v854, 1.0
    %v871 = vadd.f32 %v855, 1.0
    %v872 = vadd.f32 %v856, 1.0
    %v873 = vadd.f32 %v857, 1.0
    %v874 = vadd.f32 %v858, 1.0
    %v875 = vadd.f32 %v859, 1.0
    %v876 = vadd.f32 %v860, 1.0
    %v877 = vadd.f32 %v861, 1.0
    %v878 = vadd.f32 %v862, 1.0
    %v879 = vadd.f32 %v863, 1.0
    %v880 = vadd.f32 %v864, 1.0
    %v881 = vadd.f32 %v865, 1.0
    %v882 = vadd.f32 %v866, 1.0
    %v883 = vadd.f32 %v867, 1.0
    %v884 = vmul.f32 %v820, %v868
    %v885 = vmul.f32 %v821, %v869
    %v886 = vmul.f32 %v822, %v870
    %v887 = vmul.f32 %v823, %v871
    %v888 = vmul.f32 %v824, %v872
    %v889 = vmul.f32 %v825, %v873
    %v890 = vmul.f32 %v826, %v874
    %v891 = vmul.f32 %v827, %v875
    %v892 = vmul.f32 %v828, %v876
    %v893 = vmul.f32 %v829, %v877
    %v894 = vmul.f32 %v830, %v878
    %v895 = vmul.f32 %v831, %v879
    %v896 = vmul.f32 %v832, %v880
    %v897 = vmul.f32 %v833, %v881
    %v898 = vmul.f32 %v834, %v882
    %v899 = vmul.f32 %v835, %v883
    %v900 = vmul.f32 %v884, %v884
    %v901 = vmul.f32 %v885, %v885
    %v902 = vmul.f32 %v886, %v886
    %v903 = vmul.f32 %v887, %v887
    %v904 = vmul.f32 %v888, %v888
    %v905 = vmul.f32 %v889, %v889
    %v906 = vmul.f32 %v890, %v890
    %v907 = vmul.f32 %v891, %v891
    %v908 = vmul.f32 %v892, %v892
    %v909 = vmul.f32 %v893, %v893
    %v910 = vmul.f32 %v894, %v894
    %v911 = vmul.f32 %v895, %v895
    %v912 = vmul.f32 %v896, %v896
    %v913 = vmul.f32 %v897, %v897
    %v914 = vmul.f32 %v898, %v898
    %v915 = vmul.f32 %v899, %v899
    %v916 = vadd.f32 %v900, %v902
    %v917 = vrot.slane %v916, 4
    %v918 = vadd.f32 %v916, %v917
    %v919 = vrot.slane %v918, 2
    %v920 = vadd.f32 %v918, %v919
    %v921 = vrot.slane %v920, 1
    %v922 = vadd.f32 %v920, %v921
    %v923 = vadd.f32 %v901, %v903
    %v924 = vrot.slane %v923, 4
    %v925 = vadd.f32 %v923, %v924
    %v926 = vrot.slane %v925, 2
    %v927 = vadd.f32 %v925, %v926
    %v928 = vrot.slane %v927, 1
    %v929 = vadd.f32 %v927, %v928
    %v930 = vadd.f32 %v904, %v906
    %v931 = vrot.slane %v930, 4
    %v932 = vadd.f32 %v930, %v931
    %v933 = vrot.slane %v932, 2
    %v934 = vadd.f32 %v932, %v933
    %v935 = vrot.slane %v934, 1
    %v936 = vadd.f32 %v934, %v935
    %v937 = vadd.f32 %v905, %v907
    %v938 = vrot.slane %v937, 4
    %v939 = vadd.f32 %v937, %v938
    %v940 = vrot.slane %v939, 2
    %v941 = vadd.f32 %v939, %v940
    %v942 = vrot.slane %v941, 1
    %v943 = vadd.f32 %v941, %v942
    %v944 = vadd.f32 %v908, %v910
    %v945 = vrot.slane %v944, 4
    %v946 = vadd.f32 %v944, %v945
    %v947 = vrot.slane %v946, 2
    %v948 = vadd.f32 %v946, %v947
    %v949 = vrot.slane %v948, 1
    %v950 = vadd.f32 %v948, %v949
    %v951 = vadd.f32 %v909, %v911
    %v952 = vrot.slane %v951, 4
    %v953 = vadd.f32 %v951, %v952
    %v954 = vrot.slane %v953, 2
    %v955 = vadd.f32 %v953, %v954
    %v956 = vrot.slane %v955, 1
    %v957 = vadd.f32 %v955, %v956
    %v958 = vadd.f32 %v912, %v914
    %v959 = vrot.slane %v958, 4
    %v960 = vadd.f32 %v958, %v959
    %v961 = vrot.slane %v960, 2
    %v962 = vadd.f32 %v960, %v961
    %v963 = vrot.slane %v962, 1
    %v964 = vadd.f32 %v962, %v963
    %v965 = vadd.f32 %v913, %v915
    %v966 = vrot.slane %v965, 4
    %v967 = vadd.f32 %v965, %v966
    %v968 = vrot.slane %v967, 2
    %v969 = vadd.f32 %v967, %v968
    %v970 = vrot.slane %v969, 1
    %v971 = vadd.f32 %v969, %v970
    %v972 = vrsqrt.pop %v922
    %v973 = vmul.f32 %v922, %v972
    %vm974 = vcmp.eq.f32.partialorder %v922, inf
    %v975 = vsel %vm974, %v922, %v973
    %vm976 = vcmp.eq.f32.partialorder %v922, 0.0
    %v977 = vand.u32 %v922, 2147483648
    %v978 = vsel %vm976, %v977, %v975
    %v979 = vrsqrt.pop %v929
    %v980 = vmul.f32 %v929, %v979
    %vm981 = vcmp.eq.f32.partialorder %v929, inf
    %v982 = vsel %vm981, %v929, %v980
    %vm983 = vcmp.eq.f32.partialorder %v929, 0.0
    %v984 = vand.u32 %v929, 2147483648
    %v985 = vsel %vm983, %v984, %v982
    %v986 = vrsqrt.pop %v936
    %v987 = vmul.f32 %v936, %v986
    %vm988 = vcmp.eq.f32.partialorder %v936, inf
    %v989 = vsel %vm988, %v936, %v987
    %vm990 = vcmp.eq.f32.partialorder %v936, 0.0
    %v991 = vand.u32 %v936, 2147483648
    %v992 = vsel %vm990, %v991, %v989
    %v993 = vrsqrt.pop %v943
    %v994 = vmul.f32 %v943, %v993
    %vm995 = vcmp.eq.f32.partialorder %v943, inf
    %v996 = vsel %vm995, %v943, %v994
    %vm997 = vcmp.eq.f32.partialorder %v943, 0.0
    %v998 = vand.u32 %v943, 2147483648
    %v999 = vsel %vm997, %v998, %v996
    %v1000 = vrsqrt.pop %v950
    %v1001 = vmul.f32 %v950, %v1000
    %vm1002 = vcmp.eq.f32.partialorder %v950, inf
    %v1003 = vsel %vm1002, %v950, %v1001
    %vm1004 = vcmp.eq.f32.partialorder %v950, 0.0
    %v1005 = vand.u32 %v950, 2147483648
    %v1006 = vsel %vm1004, %v1005, %v1003
    %v1007 = vrsqrt.pop %v957
    %v1008 = vmul.f32 %v957, %v1007
    %vm1009 = vcmp.eq.f32.partialorder %v957, inf
    %v1010 = vsel %vm1009, %v957, %v1008
    %vm1011 = vcmp.eq.f32.partialorder %v957, 0.0
    %v1012 = vand.u32 %v957, 2147483648
    %v1013 = vsel %vm1011, %v1012, %v1010
    %v1014 = vrsqrt.pop %v964
    %v1015 = vmul.f32 %v964, %v1014
    %vm1016 = vcmp.eq.f32.partialorder %v964, inf
    %v1017 = vsel %vm1016, %v964, %v1015
    %vm1018 = vcmp.eq.f32.partialorder %v964, 0.0
    %v1019 = vand.u32 %v964, 2147483648
    %v1020 = vsel %vm1018, %v1019, %v1017
    %v1021 = vrsqrt.pop %v971
    %v1022 = vmul.f32 %v971, %v1021
    %vm1023 = vcmp.eq.f32.partialorder %v971, inf
    %v1024 = vsel %vm1023, %v971, %v1022
    %vm1025 = vcmp.eq.f32.partialorder %v971, 0.0
    %v1026 = vand.u32 %v971, 2147483648
    %v1027 = vsel %vm1025, %v1026, %v1024
    %v1028 = vadd.f32 %v978, %v985
    %1029 = vadd.xlane.f32.xlu0 %v1028
    %v1030 = vpop.xlane.xlu0 %1029
    %v1031 = vadd.f32 %v992, %v999
    %1032 = vadd.xlane.f32.xlu0 %v1031
    %v1033 = vpop.xlane.xlu0 %1032
    %v1034 = vadd.f32 %v1006, %v1013
    %1035 = vadd.xlane.f32.xlu0 %v1034
    %v1036 = vpop.xlane.xlu0 %1035
    %v1037 = vadd.f32 %v1020, %v1027
    %1038 = vadd.xlane.f32.xlu0 %v1037
    %v1039 = vpop.xlane.xlu0 %1038
    %v1040 = vrcp.pop 256.0
    %v1041 = vmul.f32 %v1030, %v1040
    %v1042 = vmul.f32 %v1033, %v1040
    %v1043 = vmul.f32 %v1036, %v1040
    %v1044 = vmul.f32 %v1039, %v1040
    %v1045 = vadd.f32 %v1041, 1e-06
    %v1046 = vadd.f32 %v1042, 1e-06
    %v1047 = vadd.f32 %v1043, 1e-06
    %v1048 = vadd.f32 %v1044, 1e-06
    %v1049 = vrcp.pop %v1045
    %v1050 = vmul.f32 %v978, %v1049
    %v1051 = vmul.f32 %v985, %v1049
    %v1052 = vrcp.pop %v1046
    %v1053 = vmul.f32 %v992, %v1052
    %v1054 = vmul.f32 %v999, %v1052
    %v1055 = vrcp.pop %v1047
    %v1056 = vmul.f32 %v1006, %v1055
    %v1057 = vmul.f32 %v1013, %v1055
    %v1058 = vrcp.pop %v1048
    %v1059 = vmul.f32 %v1020, %v1058
    %v1060 = vmul.f32 %v1027, %v1058
    %v1061 = vld [vmem:[%s6] sm:$0x3]
    %v1062 = vmul.f32 %v884, %v1050
    %v1063 = vmul.f32 %v885, %v1051
    %v1064 = vmul.f32 %v886, %v1050
    %v1065 = vmul.f32 %v887, %v1051
    %v1066 = vmul.f32 %v888, %v1053
    %v1067 = vmul.f32 %v889, %v1054
    %v1068 = vmul.f32 %v890, %v1053
    %v1069 = vmul.f32 %v891, %v1054
    %v1070 = vmul.f32 %v892, %v1056
    %v1071 = vmul.f32 %v893, %v1057
    %v1072 = vmul.f32 %v894, %v1056
    %v1073 = vmul.f32 %v895, %v1057
    %v1074 = vmul.f32 %v896, %v1059
    %v1075 = vmul.f32 %v897, %v1060
    %v1076 = vmul.f32 %v898, %v1059
    %v1077 = vmul.f32 %v899, %v1060
    %v1079 = vlaneseq
    %v1080 = vshrl.u32 %v1079, 7
    %v1081 = vsub.s32 0, %v1080
    %v1082 = vrot.slane %v1061, %v1081
    %v1083 = vlaneseq
    %v1084 = vshrl.u32 %v1083, 7
    %v1085 = vsub.s32 1, %v1084
    %v1086 = vrot.slane %v1061, %v1085
    %v1089 = vmul.f32 %v1082, %v1062
    %v1090 = vmul.f32 %v1086, %v1063
    %v1091 = vmul.f32 %v1082, %v1064
    %v1092 = vmul.f32 %v1086, %v1065
    %v1093 = vmul.f32 %v1082, %v1066
    %v1094 = vmul.f32 %v1086, %v1067
    %v1095 = vmul.f32 %v1082, %v1068
    %v1096 = vmul.f32 %v1086, %v1069
    %v1097 = vmul.f32 %v1082, %v1070
    %v1098 = vmul.f32 %v1086, %v1071
    %v1099 = vmul.f32 %v1082, %v1072
    %v1100 = vmul.f32 %v1086, %v1073
    %v1101 = vmul.f32 %v1082, %v1074
    %v1102 = vmul.f32 %v1086, %v1075
    %v1103 = vmul.f32 %v1082, %v1076
    %v1104 = vmul.f32 %v1086, %v1077
    %v1105 = vld [vmem:[%s7] sm:$0x3]
    %v1107 = vlaneseq
    %v1108 = vshrl.u32 %v1107, 7
    %v1109 = vsub.s32 0, %v1108
    %v1110 = vrot.slane %v1105, %v1109
    %v1111 = vlaneseq
    %v1112 = vshrl.u32 %v1111, 7
    %v1113 = vsub.s32 1, %v1112
    %v1114 = vrot.slane %v1105, %v1113
    %v1117 = vadd.f32 %v1089, %v1110
    %v1118 = vadd.f32 %v1090, %v1114
    %v1119 = vadd.f32 %v1091, %v1110
    %v1120 = vadd.f32 %v1092, %v1114
    %v1121 = vadd.f32 %v1093, %v1110
    %v1122 = vadd.f32 %v1094, %v1114
    %v1123 = vadd.f32 %v1095, %v1110
    %v1124 = vadd.f32 %v1096, %v1114
    %v1125 = vadd.f32 %v1097, %v1110
    %v1126 = vadd.f32 %v1098, %v1114
    %v1127 = vadd.f32 %v1099, %v1110
    %v1128 = vadd.f32 %v1100, %v1114
    %v1129 = vadd.f32 %v1101, %v1110
    %v1130 = vadd.f32 %v1102, %v1114
    %v1131 = vadd.f32 %v1103, %v1110
    %v1132 = vadd.f32 %v1104, %v1114
    %v1133 = vadd.f32 %v1117, %v884
    %v1134 = vadd.f32 %v1118, %v885
    %v1135 = vadd.f32 %v1119, %v886
    %v1136 = vadd.f32 %v1120, %v887
    %v1137 = vadd.f32 %v1121, %v888
    %v1138 = vadd.f32 %v1122, %v889
    %v1139 = vadd.f32 %v1123, %v890
    %v1140 = vadd.f32 %v1124, %v891
    %v1141 = vadd.f32 %v1125, %v892
    %v1142 = vadd.f32 %v1126, %v893
    %v1143 = vadd.f32 %v1127, %v894
    %v1144 = vadd.f32 %v1128, %v895
    %v1145 = vadd.f32 %v1129, %v896
    %v1146 = vadd.f32 %v1130, %v897
    %v1147 = vadd.f32 %v1131, %v898
    %v1148 = vadd.f32 %v1132, %v899
    %v1149 = vld [vmem:[#allocation9] sm:$0xff]
    %v1150 = vld [vmem:[#allocation9 + $0x8] sm:$0xff]
    %v1151 = vld [vmem:[#allocation9 + $0x10] sm:$0xff]
    %v1152 = vld [vmem:[#allocation9 + $0x18] sm:$0xff]
    %v1153 = vld [vmem:[#allocation9 + $0x20] sm:$0xff]
    %v1154 = vld [vmem:[#allocation9 + $0x28] sm:$0xff]
    %v1155 = vld [vmem:[#allocation9 + $0x30] sm:$0xff]
    %v1156 = vld [vmem:[#allocation9 + $0x38] sm:$0xff]
    %v1157 = vld [vmem:[#allocation9 + $0x40] sm:$0xff]
    %v1158 = vld [vmem:[#allocation9 + $0x48] sm:$0xff]
    %v1159 = vld [vmem:[#allocation9 + $0x50] sm:$0xff]
    %v1160 = vld [vmem:[#allocation9 + $0x58] sm:$0xff]
    %v1161 = vld [vmem:[#allocation9 + $0x60] sm:$0xff]
    %v1162 = vld [vmem:[#allocation9 + $0x68] sm:$0xff]
    %v1163 = vld [vmem:[#allocation9 + $0x70] sm:$0xff]
    %v1164 = vld [vmem:[#allocation9 + $0x78] sm:$0xff]
    %v1165 = vld [vmem:[#allocation9 + $0x80] sm:$0xff]
    %v1166 = vld [vmem:[#allocation9 + $0x88] sm:$0xff]
    %v1167 = vld [vmem:[#allocation9 + $0x90] sm:$0xff]
    %v1168 = vld [vmem:[#allocation9 + $0x98] sm:$0xff]
    %v1169 = vld [vmem:[#allocation9 + $0xa0] sm:$0xff]
    %v1170 = vld [vmem:[#allocation9 + $0xa8] sm:$0xff]
    %v1171 = vld [vmem:[#allocation9 + $0xb0] sm:$0xff]
    %v1172 = vld [vmem:[#allocation9 + $0xb8] sm:$0xff]
    %v1173 = vld [vmem:[#allocation9 + $0xc0] sm:$0xff]
    %v1174 = vld [vmem:[#allocation9 + $0xc8] sm:$0xff]
    %v1175 = vld [vmem:[#allocation9 + $0xd0] sm:$0xff]
    %v1176 = vld [vmem:[#allocation9 + $0xd8] sm:$0xff]
    %v1177 = vld [vmem:[#allocation9 + $0xe0] sm:$0xff]
    %v1178 = vld [vmem:[#allocation9 + $0xe8] sm:$0xff]
    %v1179 = vld [vmem:[#allocation9 + $0xf0] sm:$0xff]
    %v1180 = vld [vmem:[#allocation9 + $0xf8] sm:$0xff]
    %v1181 = vld [vmem:[%s9] sm:$0x1]
    %v1183 = vlaneseq
    %v1184 = vshrl.u32 %v1183, 7
    %v1185 = vsub.s32 0, %v1184
    %v1186 = vrot.slane %v1181, %v1185
    %1188 = vmatprep.subr.mxu0 0.0
    %1189 = vmatpush1.msra.mxu0 %v1149
    %1190 = vmatprep.subr.mxu0 0.0
    %1191 = vmatpush1.msra.mxu0 %v1150
    %1192 = vmatprep.subr.mxu0 0.0
    %1193 = vmatpush1.msra.mxu0 %v1151
    %1194 = vmatprep.subr.mxu0 0.0
    %1195 = vmatpush1.msra.mxu0 %v1152
    %1196 = vmatprep.subr.mxu0 0.0
    %1197 = vmatpush1.msra.mxu0 %v1153
    %1198 = vmatprep.subr.mxu0 0.0
    %1199 = vmatpush1.msra.mxu0 %v1154
    %1200 = vmatprep.subr.mxu0 0.0
    %1201 = vmatpush1.msra.mxu0 %v1155
    %1202 = vmatprep.subr.mxu0 0.0
    %1203 = vmatpush1.msra.mxu0 %v1156
    %1204 = vmatprep.subr.mxu0 0.0
    %1205 = vmatpush1.msra.mxu0 %v1157
    %1206 = vmatprep.subr.mxu0 0.0
    %1207 = vmatpush1.msra.mxu0 %v1158
    %1208 = vmatprep.subr.mxu0 0.0
    %1209 = vmatpush1.msra.mxu0 %v1159
    %1210 = vmatprep.subr.mxu0 0.0
    %1211 = vmatpush1.msra.mxu0 %v1160
    %1212 = vmatprep.subr.mxu0 0.0
    %1213 = vmatpush1.msra.mxu0 %v1161
    %1214 = vmatprep.subr.mxu0 0.0
    %1215 = vmatpush1.msra.mxu0 %v1162
    %1216 = vmatprep.subr.mxu0 0.0
    %1217 = vmatpush1.msra.mxu0 %v1163
    %1218 = vmatprep.subr.mxu0 0.0
    %1219 = vmatpush1.msra.mxu0 %v1164
    %1220 = vmatprep.subr.mxu0 0.0
    %1221 = vmatpush1.msra.mxu0 %v1165
    %1222 = vmatprep.subr.mxu0 0.0
    %1223 = vmatpush1.msra.mxu0 %v1166
    %1224 = vmatprep.subr.mxu0 0.0
    %1225 = vmatpush1.msra.mxu0 %v1167
    %1226 = vmatprep.subr.mxu0 0.0
    %1227 = vmatpush1.msra.mxu0 %v1168
    %1228 = vmatprep.subr.mxu0 0.0
    %1229 = vmatpush1.msra.mxu0 %v1169
    %1230 = vmatprep.subr.mxu0 0.0
    %1231 = vmatpush1.msra.mxu0 %v1170
    %1232 = vmatprep.subr.mxu0 0.0
    %1233 = vmatpush1.msra.mxu0 %v1171
    %1234 = vmatprep.subr.mxu0 0.0
    %1235 = vmatpush1.msra.mxu0 %v1172
    %1236 = vmatprep.subr.mxu0 0.0
    %1237 = vmatpush1.msra.mxu0 %v1173
    %1238 = vmatprep.subr.mxu0 0.0
    %1239 = vmatpush1.msra.mxu0 %v1174
    %1240 = vmatprep.subr.mxu0 0.0
    %1241 = vmatpush1.msra.mxu0 %v1175
    %1242 = vmatprep.subr.mxu0 0.0
    %1243 = vmatpush1.msra.mxu0 %v1176
    %1244 = vmatprep.subr.mxu0 0.0
    %1245 = vmatpush1.msra.mxu0 %v1177
    %1246 = vmatprep.subr.mxu0 0.0
    %1247 = vmatpush1.msra.mxu0 %v1178
    %1248 = vmatprep.subr.mxu0 0.0
    %1249 = vmatpush1.msra.mxu0 %v1179
    %1250 = vmatprep.subr.mxu0 0.0
    %1251 = vmatpush1.msra.mxu0 %v1180
    %1252 = vmatprep.mubr.f32.mxu0 %v1134
    %1253 = vmatmul.mubr.f32.gmra.mrb[0].mxu0 %v1133
    %v1254 = vpop.f32.mrb[0].mxu0
    %v1255 = vadd.f32 %v1186, %v1254
    %v1256 = vpop.f32.mrb[0].mxu0
    %1257 = vmatprep.mubr.f32.mxu0 %v1136
    %1258 = vmatmul.mubr.f32.gmra.mrb[0].mxu0 %v1135
    %v1259 = vpop.f32.mrb[0].mxu0
    %v1260 = vadd.f32 %v1186, %v1259
    %v1261 = vpop.f32.mrb[0].mxu0
    %1262 = vmatprep.mubr.f32.mxu0 %v1138
    %1263 = vmatmul.mubr.f32.gmra.mrb[0].mxu0 %v1137
    %v1264 = vpop.f32.mrb[0].mxu0
    %v1265 = vadd.f32 %v1186, %v1264
    %v1266 = vpop.f32.mrb[0].mxu0
    %1267 = vmatprep.mubr.f32.mxu0 %v1140
    %1268 = vmatmul.mubr.f32.gmra.mrb[0].mxu0 %v1139
    %v1269 = vpop.f32.mrb[0].mxu0
    %v1270 = vadd.f32 %v1186, %v1269
    %v1271 = vpop.f32.mrb[0].mxu0
    %1272 = vmatprep.mubr.f32.mxu0 %v1142
    %1273 = vmatmul.mubr.f32.gmra.mrb[0].mxu0 %v1141
    %v1274 = vpop.f32.mrb[0].mxu0
    %v1275 = vadd.f32 %v1186, %v1274
    %v1276 = vpop.f32.mrb[0].mxu0
    %1277 = vmatprep.mubr.f32.mxu0 %v1144
    %1278 = vmatmul.mubr.f32.gmra.mrb[0].mxu0 %v1143
    %v1279 = vpop.f32.mrb[0].mxu0
    %v1280 = vadd.f32 %v1186, %v1279
    %v1281 = vpop.f32.mrb[0].mxu0
    %1282 = vmatprep.mubr.f32.mxu0 %v1146
    %1283 = vmatmul.mubr.f32.gmra.mrb[0].mxu0 %v1145
    %v1284 = vpop.f32.mrb[0].mxu0
    %v1285 = vadd.f32 %v1186, %v1284
    %v1286 = vpop.f32.mrb[0].mxu0
    %1287 = vmatprep.mubr.f32.mxu0 %v1148
    %1288 = vmatmul.mubr.f32.gmra.mrb[0].mxu0 %v1147
    %v1289 = vpop.f32.mrb[0].mxu0
    %v1290 = vadd.f32 %v1186, %v1289
    %v1291 = vpop.f32.mrb[0].mxu0
    %1292 = vdwg.mxu0
    %v1293 = vld [vmem:[#allocation3] sm:$0xff]
    %v1294 = vld [vmem:[#allocation3 + $0x8] sm:$0xff]
    %v1295 = vld [vmem:[#allocation3 + $0x10] sm:$0xff]
    %v1296 = vld [vmem:[#allocation3 + $0x18] sm:$0xff]
    %v1297 = vld [vmem:[#allocation3 + $0x20] sm:$0xff]
    %v1298 = vld [vmem:[#allocation3 + $0x28] sm:$0xff]
    %v1299 = vld [vmem:[#allocation3 + $0x30] sm:$0xff]
    %v1300 = vld [vmem:[#allocation3 + $0x38] sm:$0xff]
    %v1301 = vadd.f32 %v1293, %v1255
    %v1302 = vadd.f32 %v1294, %v1260
    %v1303 = vadd.f32 %v1295, %v1265
    %v1304 = vadd.f32 %v1296, %v1270
    %v1305 = vadd.f32 %v1297, %v1275
    %v1306 = vadd.f32 %v1298, %v1280
    %v1307 = vadd.f32 %v1299, %v1285
    %v1308 = vadd.f32 %v1300, %v1290
    %1309 = vst [vmem:[#allocation11] sm:$0xff] %v1301
    %1310 = vst [vmem:[#allocation11 + $0x8] sm:$0xff] %v1302
    %1311 = vst [vmem:[#allocation11 + $0x10] sm:$0xff] %v1303
    %1312 = vst [vmem:[#allocation11 + $0x18] sm:$0xff] %v1304
    %1313 = vst [vmem:[#allocation11 + $0x20] sm:$0xff] %v1305
    %1314 = vst [vmem:[#allocation11 + $0x28] sm:$0xff] %v1306
    %1315 = vst [vmem:[#allocation11 + $0x30] sm:$0xff] %v1307
    %1316 = vst [vmem:[#allocation11 + $0x38] sm:$0xff] %v1308
    // Predicated region
    $region58: #{tpu_custom_call.1} parent=1 // pred_check
      _
    $region59: #{tpu_custom_call.1} parent=1 // pred_check_branch
      %1318 = sbr.rel (0) target = $region61
    $region60: #{tpu_custom_call.1} parent=1 // pred_region
      %s1320 = ssub.s32 1024, 1024
      %1321 = vsyncadd [#allocation5], %s1320
      %s1322 = sshll.u32 [#allocation11], 4
      %s1323 = int_to_ptr.vmem [resolvable:$true] %s1322
      %1328 = dma.vmem_to_hbm [thread:$0]  %s1323, 1024, %s10, [#allocation5], 128, 128, 8
    $region61: #{tpu_custom_call.1} parent=1 // pred_fallthru
      _
    // Predicated region
    $region62: #{tpu_custom_call.1} parent=1 // pred_check
      _
    $region63: #{tpu_custom_call.1} parent=1 // pred_check_branch
      %1330 = sbr.rel (0) target = $region65
    $region64: #{tpu_custom_call.1} parent=1 // pred_region
      %1331 = dma.done [#allocation5], 1024
    $region65: #{tpu_custom_call.1} parent=1 // pred_fallthru
      _
    %1332 = vsyncpa [#allocation4], 1
    %1333 = vsyncpa [#allocation7], 1
    %1334 = vsyncpa [#allocation10], 1
    %1335 = vsyncpa [#allocation5], 1

</llo_original>
